<compile_context>
chip_gen: v5e
topology: v5e:2x2
jax: 0.10.0
libtpu: 0.0.40
codegen_flags: <defaults>
</compile_context>

<pallas_src>
import jax
import jax.numpy as jnp
from jax.experimental import pallas as pl
from jax.experimental.pallas import tpu as pltpu


def _sigmoid(x):
    # sigmoid(x) == 0.5 * (1 + tanh(x / 2)): EUP tanh, no f32 divide on the VPU path.
    return 0.5 * jnp.tanh(0.5 * x) + 0.5


def decoder_kernel(tok_ref, emb_ref, h_ref, c_ref,
                   w0_ref, b0_ref, w1_ref, b1_ref, wfc_ref, bfc_ref,
                   pred_ref, ho_ref, co_ref,
                   xh0, xh1):
    """Single fused decode step; the whole (small) problem lives in VMEM.

    Hot path = 3 bf16 MXU matmuls (one fused [x,h] matmul per LSTM layer + FC)
    separated only by f32 VPU/EUP gate math.
    """
    N = xh0.shape[0]
    E = emb_ref.shape[1]
    H = h_ref.shape[-1]
    vocab = emb_ref.shape[0]

    # ---- fused embedding gather (table is VMEM-resident; no HBM row DMAs) --------
    # Rows land directly in the left half of the fused [x, h0] operand.
    # Table kept f32 in VMEM: dynamic sublane-offset loads are guaranteed-supported
    # for 32-bit; the one-time f32->bf16 cast per row is a trivial VPU op.
    # TODO(synk): embedding dropout / LSTM inter-layer dropout are identity (eval mode).
    for i in range(N):
        tok = jnp.clip(tok_ref[i], 0, vocab - 1)            # cheap scalar OOB guard
        xh0[pl.ds(i, 1), pl.ds(0, E)] = (
            emb_ref[pl.ds(tok, 1), :].astype(jnp.bfloat16))
    xh0[:, pl.ds(E, H)] = h_ref[0].astype(jnp.bfloat16)

    def lstm_gates(gates, c):
        # PyTorch gate order i | f | g | o ; H % 128 == 0 -> lane-aligned slices.
        i_g = _sigmoid(gates[:, 0 * H:1 * H])
        f_g = _sigmoid(gates[:, 1 * H:2 * H])
        g_g = jnp.tanh(gates[:, 2 * H:3 * H])
        o_g = _sigmoid(gates[:, 3 * H:4 * H])
        c_new = f_g * c + i_g * g_g
        h_new = o_g * jnp.tanh(c_new)
        return h_new, c_new

    # ---- layer 0: fused [x, h0] @ [W_ih^T ; W_hh^T] -> (N, 4H) f32 ----------------
    g0 = jnp.dot(xh0[...], w0_ref[...], preferred_element_type=jnp.float32) + b0_ref[...]
    h0n, c0n = lstm_gates(g0, c_ref[0])

    # ---- layer 1 ------------------------------------------------------------------
    xh1[:, pl.ds(0, H)] = h0n.astype(jnp.bfloat16)
    xh1[:, pl.ds(H, H)] = h_ref[1].astype(jnp.bfloat16)
    g1 = jnp.dot(xh1[...], w1_ref[...], preferred_element_type=jnp.float32) + b1_ref[...]
    h1n, c1n = lstm_gates(g1, c_ref[1])

    # ---- FC head (lane-dense output, V % 128 == 0) --------------------------------
    pred_ref[...] = (jnp.dot(h1n.astype(jnp.bfloat16), wfc_ref[...],
                             preferred_element_type=jnp.float32)
                     + bfc_ref[...])

    ho_ref[0] = h0n
    ho_ref[1] = h1n
    co_ref[0] = c0n
    co_ref[1] = c1n


def decoder_forward(x_tokens, hidden, cell, params):
    """Mirrors Decoder.forward(x, hidden, cell): returns (predictions, hidden, cell)."""
    N = x_tokens.shape[0]
    L, _, H = hidden.shape
    E = params["emb_table"].shape[1]
    V = params["wfc_t"].shape[1]

    inputs = (x_tokens, params["emb_table"], hidden, cell,
              params["w0"], params["b0"], params["w1"], params["b1"],
              params["wfc_t"], params["bfc"])

    smem_spec = pl.BlockSpec(memory_space=pltpu.MemorySpace.SMEM)
    vmem_spec = pl.BlockSpec(memory_space=pltpu.MemorySpace.VMEM)
    in_specs = [smem_spec] + [vmem_spec] * (len(inputs) - 1)

    out_shapes = (
        jax.ShapeDtypeStruct((N, V), jnp.float32),      # predictions (lane-dense)
        jax.ShapeDtypeStruct((L, N, H), jnp.float32),   # hidden (aliased with input 2)
        jax.ShapeDtypeStruct((L, N, H), jnp.float32),   # cell   (aliased with input 3)
    )
    out_specs = (vmem_spec, vmem_spec, vmem_spec)

    flops = 2 * N * (E + H) * 4 * H + 2 * N * (2 * H) * 4 * H + 2 * N * H * V
    transcendentals = 2 * 5 * N * H
    bytes_accessed = (
        N * 4 + int(params["emb_table"].size) * 4       # token ids + embedding table
        + 2 * (2 * L * N * H * 4)                       # h/c in + out
        + sum(int(params[k].size) * params[k].dtype.itemsize
              for k in ("w0", "b0", "w1", "b1", "wfc_t", "bfc"))
        + N * V * 4)

    pred, hidden_new, cell_new = pl.pallas_call(
        decoder_kernel,
        out_shape=out_shapes,
        in_specs=in_specs,
        out_specs=out_specs,
        scratch_shapes=[
            pltpu.VMEM((N, E + H), jnp.bfloat16),       # fused [x, h0] MXU operand
            pltpu.VMEM((N, 2 * H), jnp.bfloat16),       # fused [h0', h1] MXU operand
        ],
        input_output_aliases={2: 1, 3: 2},              # hidden / cell updated in place
        cost_estimate=pl.CostEstimate(
            flops=flops,
            transcendentals=transcendentals,
            bytes_accessed=bytes_accessed),
        compiler_params=pltpu.CompilerParams(
            vmem_limit_bytes=32 * 1024 * 1024),
    )(*inputs)

    return pred, hidden_new, cell_new


def init_params(key, input_size, embedding_size, hidden_size, output_size):
    """Synthetic parameters in PyTorch layout, then fused/transposed/bf16-cast for the kernel."""
    ks = jax.random.split(key, 11)
    E, H, V = embedding_size, hidden_size, output_size
    s = 0.1

    emb_table = jax.random.normal(ks[0], (input_size, E), jnp.float32) * s

    # nn.LSTM layer 0: input E -> hidden H  (PyTorch gate order i,f,g,o)
    wih0 = jax.random.normal(ks[1], (4 * H, E), jnp.float32) * s
    whh0 = jax.random.normal(ks[2], (4 * H, H), jnp.float32) * s
    bih0 = jax.random.normal(ks[3], (4 * H,), jnp.float32) * s
    bhh0 = jax.random.normal(ks[4], (4 * H,), jnp.float32) * s
    # nn.LSTM layer 1: input H -> hidden H
    wih1 = jax.random.normal(ks[5], (4 * H, H), jnp.float32) * s
    whh1 = jax.random.normal(ks[6], (4 * H, H), jnp.float32) * s
    bih1 = jax.random.normal(ks[7], (4 * H,), jnp.float32) * s
    bhh1 = jax.random.normal(ks[8], (4 * H,), jnp.float32) * s
    # fc: H -> V
    wfc = jax.random.normal(ks[9], (V, H), jnp.float32) * s
    bfc = jax.random.normal(ks[10], (V,), jnp.float32) * s

    bf16 = jnp.bfloat16
    return {
        "emb_table": emb_table,                                          # f32, VMEM-resident
        # fused [W_ih^T ; W_hh^T] -> (in + H, 4H), bf16 MXU operands
        "w0": jnp.concatenate([wih0, whh0], axis=1).T.astype(bf16),      # (E + H, 4H)
        "w1": jnp.concatenate([wih1, whh1], axis=1).T.astype(bf16),      # (2H, 4H)
        # fused biases stay f32 and are added after the f32 accumulation
        "b0": (bih0 + bhh0).reshape(1, 4 * H),
        "b1": (bih1 + bhh1).reshape(1, 4 * H),
        "wfc_t": wfc.T.astype(bf16),                                     # (H, V)
        "bfc": bfc.reshape(1, V),
    }


if __name__ == "__main__":
    # Small, tile-aligned shapes consistent with the module's forward pass.
    input_size = 50       # decoder-input vocab for the embedding (toy)
    embedding_size = 128  # lane-tile aligned
    hidden_size = 128     # lane-tile aligned -> gate slices land on 128-lane boundaries
    output_size = 256     # stand-in for len(english.vocab); multiple of 128
    num_layers = 2
    N = 16                # batch: fills a full bf16 sublane pack

    key = jax.random.PRNGKey(0)
    kp, kx, kh, kc = jax.random.split(key, 4)

    params = init_params(kp, input_size, embedding_size, hidden_size, output_size)

    x = jax.random.randint(kx, (N,), 0, input_size, dtype=jnp.int32)
    hidden = jax.random.normal(kh, (num_layers, N, hidden_size), jnp.float32) * 0.1
    cell = jax.random.normal(kc, (num_layers, N, hidden_size), jnp.float32) * 0.1

    pred, h_new, c_new = decoder_forward(x, hidden, cell, params)
    jax.block_until_ready((pred, h_new, c_new))

    assert pred.shape == (N, output_size)
    assert h_new.shape == (num_layers, N, hidden_size)
    assert c_new.shape == (num_layers, N, hidden_size)
    assert bool(jnp.all(jnp.isfinite(pred)))
    print("KERNEL_OK")
</pallas_src>

<mosaic_0001>
module attributes {stable_mosaic.version = 11 : i64} {
  func.func @decoder_kernel(%arg0: memref<16xi32, #tpu.memory_space<smem>>, %arg1: memref<50x128xf32, #tpu.memory_space<vmem>>, %arg2: memref<2x16x128xf32, #tpu.memory_space<vmem>>, %arg3: memref<2x16x128xf32, #tpu.memory_space<vmem>>, %arg4: memref<256x512xbf16, #tpu.memory_space<vmem>>, %arg5: memref<1x512xf32, #tpu.memory_space<vmem>>, %arg6: memref<256x512xbf16, #tpu.memory_space<vmem>>, %arg7: memref<1x512xf32, #tpu.memory_space<vmem>>, %arg8: memref<128x256xbf16, #tpu.memory_space<vmem>>, %arg9: memref<1x256xf32, #tpu.memory_space<vmem>>, %arg10: memref<16x256xf32, #tpu.memory_space<vmem>>, %arg11: memref<2x16x128xf32, #tpu.memory_space<vmem>>, %arg12: memref<2x16x128xf32, #tpu.memory_space<vmem>>, %arg13: memref<16x256xbf16, #tpu.memory_space<vmem>>, %arg14: memref<16x256xbf16, #tpu.memory_space<vmem>>) attributes {dimension_semantics = [], scalar_prefetch = 0 : i64, scratch_operands = 2 : i64, tpu.core_type = #tpu.core_type<tc>} {
    %c0 = arith.constant 0 : index
    %0 = memref.load %arg0[%c0] : memref<16xi32, #tpu.memory_space<smem>>
    %c0_i32 = arith.constant 0 : i32
    %c49_i32 = arith.constant 49 : i32
    %1 = arith.maxsi %c0_i32, %0 : i32
    %2 = arith.minsi %c49_i32, %1 : i32
    %3 = arith.index_cast %2 : i32 to index
    %c0_0 = arith.constant 0 : index
    %4 = vector.load %arg1[%3, %c0_0] : memref<50x128xf32, #tpu.memory_space<vmem>>, vector<1x128xf32>
    %5 = arith.truncf %4 : vector<1x128xf32> to vector<1x128xbf16>
    %c0_1 = arith.constant 0 : index
    %c0_2 = arith.constant 0 : index
    %6 = vector.load %arg13[%c0_1, %c0_2] : memref<16x256xbf16, #tpu.memory_space<vmem>>, vector<1x128xbf16>
    tpu.vector_store %arg13[%c0_1, %c0_2], %5 {strides = array<i32>} : memref<16x256xbf16, #tpu.memory_space<vmem>>, vector<1x128xbf16>,
    %c1 = arith.constant 1 : index
    %7 = memref.load %arg0[%c1] : memref<16xi32, #tpu.memory_space<smem>>
    %c0_i32_3 = arith.constant 0 : i32
    %c49_i32_4 = arith.constant 49 : i32
    %8 = arith.maxsi %c0_i32_3, %7 : i32
    %9 = arith.minsi %c49_i32_4, %8 : i32
    %10 = arith.index_cast %9 : i32 to index
    %c0_5 = arith.constant 0 : index
    %11 = vector.load %arg1[%10, %c0_5] : memref<50x128xf32, #tpu.memory_space<vmem>>, vector<1x128xf32>
    %12 = arith.truncf %11 : vector<1x128xf32> to vector<1x128xbf16>
    %c1_6 = arith.constant 1 : index
    %c0_7 = arith.constant 0 : index
    %13 = vector.load %arg13[%c1_6, %c0_7] : memref<16x256xbf16, #tpu.memory_space<vmem>>, vector<1x128xbf16>
    tpu.vector_store %arg13[%c1_6, %c0_7], %12 {strides = array<i32>} : memref<16x256xbf16, #tpu.memory_space<vmem>>, vector<1x128xbf16>,
    %c2 = arith.constant 2 : index
    %14 = memref.load %arg0[%c2] : memref<16xi32, #tpu.memory_space<smem>>
    %c0_i32_8 = arith.constant 0 : i32
    %c49_i32_9 = arith.constant 49 : i32
    %15 = arith.maxsi %c0_i32_8, %14 : i32
    %16 = arith.minsi %c49_i32_9, %15 : i32
    %17 = arith.index_cast %16 : i32 to index
    %c0_10 = arith.constant 0 : index
    %18 = vector.load %arg1[%17, %c0_10] : memref<50x128xf32, #tpu.memory_space<vmem>>, vector<1x128xf32>
    %19 = arith.truncf %18 : vector<1x128xf32> to vector<1x128xbf16>
    %c2_11 = arith.constant 2 : index
    %c0_12 = arith.constant 0 : index
    %20 = vector.load %arg13[%c2_11, %c0_12] : memref<16x256xbf16, #tpu.memory_space<vmem>>, vector<1x128xbf16>
    tpu.vector_store %arg13[%c2_11, %c0_12], %19 {strides = array<i32>} : memref<16x256xbf16, #tpu.memory_space<vmem>>, vector<1x128xbf16>,
    %c3 = arith.constant 3 : index
    %21 = memref.load %arg0[%c3] : memref<16xi32, #tpu.memory_space<smem>>
    %c0_i32_13 = arith.constant 0 : i32
    %c49_i32_14 = arith.constant 49 : i32
    %22 = arith.maxsi %c0_i32_13, %21 : i32
    %23 = arith.minsi %c49_i32_14, %22 : i32
    %24 = arith.index_cast %23 : i32 to index
    %c0_15 = arith.constant 0 : index
    %25 = vector.load %arg1[%24, %c0_15] : memref<50x128xf32, #tpu.memory_space<vmem>>, vector<1x128xf32>
    %26 = arith.truncf %25 : vector<1x128xf32> to vector<1x128xbf16>
    %c3_16 = arith.constant 3 : index
    %c0_17 = arith.constant 0 : index
    %27 = vector.load %arg13[%c3_16, %c0_17] : memref<16x256xbf16, #tpu.memory_space<vmem>>, vector<1x128xbf16>
    tpu.vector_store %arg13[%c3_16, %c0_17], %26 {strides = array<i32>} : memref<16x256xbf16, #tpu.memory_space<vmem>>, vector<1x128xbf16>,
    %c4 = arith.constant 4 : index
    %28 = memref.load %arg0[%c4] : memref<16xi32, #tpu.memory_space<smem>>
    %c0_i32_18 = arith.constant 0 : i32
    %c49_i32_19 = arith.constant 49 : i32
    %29 = arith.maxsi %c0_i32_18, %28 : i32
    %30 = arith.minsi %c49_i32_19, %29 : i32
    %31 = arith.index_cast %30 : i32 to index
    %c0_20 = arith.constant 0 : index
    %32 = vector.load %arg1[%31, %c0_20] : memref<50x128xf32, #tpu.memory_space<vmem>>, vector<1x128xf32>
    %33 = arith.truncf %32 : vector<1x128xf32> to vector<1x128xbf16>
    %c4_21 = arith.constant 4 : index
    %c0_22 = arith.constant 0 : index
    %34 = vector.load %arg13[%c4_21, %c0_22] : memref<16x256xbf16, #tpu.memory_space<vmem>>, vector<1x128xbf16>
    tpu.vector_store %arg13[%c4_21, %c0_22], %33 {strides = array<i32>} : memref<16x256xbf16, #tpu.memory_space<vmem>>, vector<1x128xbf16>,
    %c5 = arith.constant 5 : index
    %35 = memref.load %arg0[%c5] : memref<16xi32, #tpu.memory_space<smem>>
    %c0_i32_23 = arith.constant 0 : i32
    %c49_i32_24 = arith.constant 49 : i32
    %36 = arith.maxsi %c0_i32_23, %35 : i32
    %37 = arith.minsi %c49_i32_24, %36 : i32
    %38 = arith.index_cast %37 : i32 to index
    %c0_25 = arith.constant 0 : index
    %39 = vector.load %arg1[%38, %c0_25] : memref<50x128xf32, #tpu.memory_space<vmem>>, vector<1x128xf32>
    %40 = arith.truncf %39 : vector<1x128xf32> to vector<1x128xbf16>
    %c5_26 = arith.constant 5 : index
    %c0_27 = arith.constant 0 : index
    %41 = vector.load %arg13[%c5_26, %c0_27] : memref<16x256xbf16, #tpu.memory_space<vmem>>, vector<1x128xbf16>
    tpu.vector_store %arg13[%c5_26, %c0_27], %40 {strides = array<i32>} : memref<16x256xbf16, #tpu.memory_space<vmem>>, vector<1x128xbf16>,
    %c6 = arith.constant 6 : index
    %42 = memref.load %arg0[%c6] : memref<16xi32, #tpu.memory_space<smem>>
    %c0_i32_28 = arith.constant 0 : i32
    %c49_i32_29 = arith.constant 49 : i32
    %43 = arith.maxsi %c0_i32_28, %42 : i32
    %44 = arith.minsi %c49_i32_29, %43 : i32
    %45 = arith.index_cast %44 : i32 to index
    %c0_30 = arith.constant 0 : index
    %46 = vector.load %arg1[%45, %c0_30] : memref<50x128xf32, #tpu.memory_space<vmem>>, vector<1x128xf32>
    %47 = arith.truncf %46 : vector<1x128xf32> to vector<1x128xbf16>
    %c6_31 = arith.constant 6 : index
    %c0_32 = arith.constant 0 : index
    %48 = vector.load %arg13[%c6_31, %c0_32] : memref<16x256xbf16, #tpu.memory_space<vmem>>, vector<1x128xbf16>
    tpu.vector_store %arg13[%c6_31, %c0_32], %47 {strides = array<i32>} : memref<16x256xbf16, #tpu.memory_space<vmem>>, vector<1x128xbf16>,
    %c7 = arith.constant 7 : index
    %49 = memref.load %arg0[%c7] : memref<16xi32, #tpu.memory_space<smem>>
    %c0_i32_33 = arith.constant 0 : i32
    %c49_i32_34 = arith.constant 49 : i32
    %50 = arith.maxsi %c0_i32_33, %49 : i32
    %51 = arith.minsi %c49_i32_34, %50 : i32
    %52 = arith.index_cast %51 : i32 to index
    %c0_35 = arith.constant 0 : index
    %53 = vector.load %arg1[%52, %c0_35] : memref<50x128xf32, #tpu.memory_space<vmem>>, vector<1x128xf32>
    %54 = arith.truncf %53 : vector<1x128xf32> to vector<1x128xbf16>
    %c7_36 = arith.constant 7 : index
    %c0_37 = arith.constant 0 : index
    %55 = vector.load %arg13[%c7_36, %c0_37] : memref<16x256xbf16, #tpu.memory_space<vmem>>, vector<1x128xbf16>
    tpu.vector_store %arg13[%c7_36, %c0_37], %54 {strides = array<i32>} : memref<16x256xbf16, #tpu.memory_space<vmem>>, vector<1x128xbf16>,
    %c8 = arith.constant 8 : index
    %56 = memref.load %arg0[%c8] : memref<16xi32, #tpu.memory_space<smem>>
    %c0_i32_38 = arith.constant 0 : i32
    %c49_i32_39 = arith.constant 49 : i32
    %57 = arith.maxsi %c0_i32_38, %56 : i32
    %58 = arith.minsi %c49_i32_39, %57 : i32
    %59 = arith.index_cast %58 : i32 to index
    %c0_40 = arith.constant 0 : index
    %60 = vector.load %arg1[%59, %c0_40] : memref<50x128xf32, #tpu.memory_space<vmem>>, vector<1x128xf32>
    %61 = arith.truncf %60 : vector<1x128xf32> to vector<1x128xbf16>
    %c8_41 = arith.constant 8 : index
    %c0_42 = arith.constant 0 : index
    %62 = vector.load %arg13[%c8_41, %c0_42] : memref<16x256xbf16, #tpu.memory_space<vmem>>, vector<1x128xbf16>
    tpu.vector_store %arg13[%c8_41, %c0_42], %61 {strides = array<i32>} : memref<16x256xbf16, #tpu.memory_space<vmem>>, vector<1x128xbf16>,
    %c9 = arith.constant 9 : index
    %63 = memref.load %arg0[%c9] : memref<16xi32, #tpu.memory_space<smem>>
    %c0_i32_43 = arith.constant 0 : i32
    %c49_i32_44 = arith.constant 49 : i32
    %64 = arith.maxsi %c0_i32_43, %63 : i32
    %65 = arith.minsi %c49_i32_44, %64 : i32
    %66 = arith.index_cast %65 : i32 to index
    %c0_45 = arith.constant 0 : index
    %67 = vector.load %arg1[%66, %c0_45] : memref<50x128xf32, #tpu.memory_space<vmem>>, vector<1x128xf32>
    %68 = arith.truncf %67 : vector<1x128xf32> to vector<1x128xbf16>
    %c9_46 = arith.constant 9 : index
    %c0_47 = arith.constant 0 : index
    %69 = vector.load %arg13[%c9_46, %c0_47] : memref<16x256xbf16, #tpu.memory_space<vmem>>, vector<1x128xbf16>
    tpu.vector_store %arg13[%c9_46, %c0_47], %68 {strides = array<i32>} : memref<16x256xbf16, #tpu.memory_space<vmem>>, vector<1x128xbf16>,
    %c10 = arith.constant 10 : index
    %70 = memref.load %arg0[%c10] : memref<16xi32, #tpu.memory_space<smem>>
    %c0_i32_48 = arith.constant 0 : i32
    %c49_i32_49 = arith.constant 49 : i32
    %71 = arith.maxsi %c0_i32_48, %70 : i32
    %72 = arith.minsi %c49_i32_49, %71 : i32
    %73 = arith.index_cast %72 : i32 to index
    %c0_50 = arith.constant 0 : index
    %74 = vector.load %arg1[%73, %c0_50] : memref<50x128xf32, #tpu.memory_space<vmem>>, vector<1x128xf32>
    %75 = arith.truncf %74 : vector<1x128xf32> to vector<1x128xbf16>
    %c10_51 = arith.constant 10 : index
    %c0_52 = arith.constant 0 : index
    %76 = vector.load %arg13[%c10_51, %c0_52] : memref<16x256xbf16, #tpu.memory_space<vmem>>, vector<1x128xbf16>
    tpu.vector_store %arg13[%c10_51, %c0_52], %75 {strides = array<i32>} : memref<16x256xbf16, #tpu.memory_space<vmem>>, vector<1x128xbf16>,
    %c11 = arith.constant 11 : index
    %77 = memref.load %arg0[%c11] : memref<16xi32, #tpu.memory_space<smem>>
    %c0_i32_53 = arith.constant 0 : i32
    %c49_i32_54 = arith.constant 49 : i32
    %78 = arith.maxsi %c0_i32_53, %77 : i32
    %79 = arith.minsi %c49_i32_54, %78 : i32
    %80 = arith.index_cast %79 : i32 to index
    %c0_55 = arith.constant 0 : index
    %81 = vector.load %arg1[%80, %c0_55] : memref<50x128xf32, #tpu.memory_space<vmem>>, vector<1x128xf32>
    %82 = arith.truncf %81 : vector<1x128xf32> to vector<1x128xbf16>
    %c11_56 = arith.constant 11 : index
    %c0_57 = arith.constant 0 : index
    %83 = vector.load %arg13[%c11_56, %c0_57] : memref<16x256xbf16, #tpu.memory_space<vmem>>, vector<1x128xbf16>
    tpu.vector_store %arg13[%c11_56, %c0_57], %82 {strides = array<i32>} : memref<16x256xbf16, #tpu.memory_space<vmem>>, vector<1x128xbf16>,
    %c12 = arith.constant 12 : index
    %84 = memref.load %arg0[%c12] : memref<16xi32, #tpu.memory_space<smem>>
    %c0_i32_58 = arith.constant 0 : i32
    %c49_i32_59 = arith.constant 49 : i32
    %85 = arith.maxsi %c0_i32_58, %84 : i32
    %86 = arith.minsi %c49_i32_59, %85 : i32
    %87 = arith.index_cast %86 : i32 to index
    %c0_60 = arith.constant 0 : index
    %88 = vector.load %arg1[%87, %c0_60] : memref<50x128xf32, #tpu.memory_space<vmem>>, vector<1x128xf32>
    %89 = arith.truncf %88 : vector<1x128xf32> to vector<1x128xbf16>
    %c12_61 = arith.constant 12 : index
    %c0_62 = arith.constant 0 : index
    %90 = vector.load %arg13[%c12_61, %c0_62] : memref<16x256xbf16, #tpu.memory_space<vmem>>, vector<1x128xbf16>
    tpu.vector_store %arg13[%c12_61, %c0_62], %89 {strides = array<i32>} : memref<16x256xbf16, #tpu.memory_space<vmem>>, vector<1x128xbf16>,
    %c13 = arith.constant 13 : index
    %91 = memref.load %arg0[%c13] : memref<16xi32, #tpu.memory_space<smem>>
    %c0_i32_63 = arith.constant 0 : i32
    %c49_i32_64 = arith.constant 49 : i32
    %92 = arith.maxsi %c0_i32_63, %91 : i32
    %93 = arith.minsi %c49_i32_64, %92 : i32
    %94 = arith.index_cast %93 : i32 to index
    %c0_65 = arith.constant 0 : index
    %95 = vector.load %arg1[%94, %c0_65] : memref<50x128xf32, #tpu.memory_space<vmem>>, vector<1x128xf32>
    %96 = arith.truncf %95 : vector<1x128xf32> to vector<1x128xbf16>
    %c13_66 = arith.constant 13 : index
    %c0_67 = arith.constant 0 : index
    %97 = vector.load %arg13[%c13_66, %c0_67] : memref<16x256xbf16, #tpu.memory_space<vmem>>, vector<1x128xbf16>
    tpu.vector_store %arg13[%c13_66, %c0_67], %96 {strides = array<i32>} : memref<16x256xbf16, #tpu.memory_space<vmem>>, vector<1x128xbf16>,
    %c14 = arith.constant 14 : index
    %98 = memref.load %arg0[%c14] : memref<16xi32, #tpu.memory_space<smem>>
    %c0_i32_68 = arith.constant 0 : i32
    %c49_i32_69 = arith.constant 49 : i32
    %99 = arith.maxsi %c0_i32_68, %98 : i32
    %100 = arith.minsi %c49_i32_69, %99 : i32
    %101 = arith.index_cast %100 : i32 to index
    %c0_70 = arith.constant 0 : index
    %102 = vector.load %arg1[%101, %c0_70] : memref<50x128xf32, #tpu.memory_space<vmem>>, vector<1x128xf32>
    %103 = arith.truncf %102 : vector<1x128xf32> to vector<1x128xbf16>
    %c14_71 = arith.constant 14 : index
    %c0_72 = arith.constant 0 : index
    %104 = vector.load %arg13[%c14_71, %c0_72] : memref<16x256xbf16, #tpu.memory_space<vmem>>, vector<1x128xbf16>
    tpu.vector_store %arg13[%c14_71, %c0_72], %103 {strides = array<i32>} : memref<16x256xbf16, #tpu.memory_space<vmem>>, vector<1x128xbf16>,
    %c15 = arith.constant 15 : index
    %105 = memref.load %arg0[%c15] : memref<16xi32, #tpu.memory_space<smem>>
    %c0_i32_73 = arith.constant 0 : i32
    %c49_i32_74 = arith.constant 49 : i32
    %106 = arith.maxsi %c0_i32_73, %105 : i32
    %107 = arith.minsi %c49_i32_74, %106 : i32
    %108 = arith.index_cast %107 : i32 to index
    %c0_75 = arith.constant 0 : index
    %109 = vector.load %arg1[%108, %c0_75] : memref<50x128xf32, #tpu.memory_space<vmem>>, vector<1x128xf32>
    %110 = arith.truncf %109 : vector<1x128xf32> to vector<1x128xbf16>
    %c15_76 = arith.constant 15 : index
    %c0_77 = arith.constant 0 : index
    %111 = vector.load %arg13[%c15_76, %c0_77] : memref<16x256xbf16, #tpu.memory_space<vmem>>, vector<1x128xbf16>
    tpu.vector_store %arg13[%c15_76, %c0_77], %110 {strides = array<i32>} : memref<16x256xbf16, #tpu.memory_space<vmem>>, vector<1x128xbf16>,
    %c0_78 = arith.constant 0 : index
    %c0_79 = arith.constant 0 : index
    %c0_80 = arith.constant 0 : index
    %112 = vector.load %arg2[%c0_78, %c0_79, %c0_80] : memref<2x16x128xf32, #tpu.memory_space<vmem>>, vector<1x16x128xf32>
    %113 = vector.shape_cast %112 : vector<1x16x128xf32> to vector<16x128xf32>
    %114 = arith.truncf %113 : vector<16x128xf32> to vector<16x128xbf16>
    %c0_81 = arith.constant 0 : index
    %c128 = arith.constant 128 : index
    %115 = vector.load %arg13[%c0_81, %c128] : memref<16x256xbf16, #tpu.memory_space<vmem>>, vector<16x128xbf16>
    tpu.vector_store %arg13[%c0_81, %c128], %114 {strides = array<i32>} : memref<16x256xbf16, #tpu.memory_space<vmem>>, vector<16x128xbf16>,
    %c0_82 = arith.constant 0 : index
    %c0_83 = arith.constant 0 : index
    %116 = vector.load %arg13[%c0_82, %c0_83] : memref<16x256xbf16, #tpu.memory_space<vmem>>, vector<16x256xbf16>
    %c0_84 = arith.constant 0 : index
    %c0_85 = arith.constant 0 : index
    %117 = vector.load %arg4[%c0_84, %c0_85] : memref<256x512xbf16, #tpu.memory_space<vmem>>, vector<256x512xbf16>
    %cst = arith.constant dense<0.000000e+00> : vector<16x512xf32>
    %118 = tpu.matmul %116, %117, %cst {dimension_numbers = #tpu.dot_dimension_numbers<[1], [0], [0], [1], [0, 0, 1, 1], [], []>} : vector<16x256xbf16>, vector<256x512xbf16>, vector<16x512xf32> -> vector<16x512xf32>
    %c0_86 = arith.constant 0 : index
    %c0_87 = arith.constant 0 : index
    %119 = vector.load %arg5[%c0_86, %c0_87] : memref<1x512xf32, #tpu.memory_space<vmem>>, vector<1x512xf32>
    %120 = vector.broadcast %119 : vector<1x512xf32> to vector<16x512xf32>
    %121 = arith.addf %118, %120 : vector<16x512xf32>
    %c0_88 = arith.constant 0 : index
    %c0_89 = arith.constant 0 : index
    %c0_90 = arith.constant 0 : index
    %122 = vector.load %arg3[%c0_88, %c0_89, %c0_90] : memref<2x16x128xf32, #tpu.memory_space<vmem>>, vector<1x16x128xf32>
    %123 = vector.shape_cast %122 : vector<1x16x128xf32> to vector<16x128xf32>
    %124 = vector.extract_strided_slice %121 {offsets = [0, 0], sizes = [16, 128], strides = [1, 1]} : vector<16x512xf32> to vector<16x128xf32>
    %cst_91 = arith.constant 5.000000e-01 : f32
    %125 = vector.broadcast %cst_91 : f32 to vector<16x128xf32>
    %126 = arith.mulf %125, %124 : vector<16x128xf32>
    %127 = math.tanh %126 : vector<16x128xf32>
    %cst_92 = arith.constant 5.000000e-01 : f32
    %128 = vector.broadcast %cst_92 : f32 to vector<16x128xf32>
    %129 = arith.mulf %128, %127 : vector<16x128xf32>
    %cst_93 = arith.constant 5.000000e-01 : f32
    %130 = vector.broadcast %cst_93 : f32 to vector<16x128xf32>
    %131 = arith.addf %129, %130 : vector<16x128xf32>
    %132 = vector.extract_strided_slice %121 {offsets = [0, 128], sizes = [16, 128], strides = [1, 1]} : vector<16x512xf32> to vector<16x128xf32>
    %cst_94 = arith.constant 5.000000e-01 : f32
    %133 = vector.broadcast %cst_94 : f32 to vector<16x128xf32>
    %134 = arith.mulf %133, %132 : vector<16x128xf32>
    %135 = math.tanh %134 : vector<16x128xf32>
    %cst_95 = arith.constant 5.000000e-01 : f32
    %136 = vector.broadcast %cst_95 : f32 to vector<16x128xf32>
    %137 = arith.mulf %136, %135 : vector<16x128xf32>
    %cst_96 = arith.constant 5.000000e-01 : f32
    %138 = vector.broadcast %cst_96 : f32 to vector<16x128xf32>
    %139 = arith.addf %137, %138 : vector<16x128xf32>
    %140 = vector.extract_strided_slice %121 {offsets = [0, 256], sizes = [16, 128], strides = [1, 1]} : vector<16x512xf32> to vector<16x128xf32>
    %141 = math.tanh %140 : vector<16x128xf32>
    %142 = vector.extract_strided_slice %121 {offsets = [0, 384], sizes = [16, 128], strides = [1, 1]} : vector<16x512xf32> to vector<16x128xf32>
    %cst_97 = arith.constant 5.000000e-01 : f32
    %143 = vector.broadcast %cst_97 : f32 to vector<16x128xf32>
    %144 = arith.mulf %143, %142 : vector<16x128xf32>
    %145 = math.tanh %144 : vector<16x128xf32>
    %cst_98 = arith.constant 5.000000e-01 : f32
    %146 = vector.broadcast %cst_98 : f32 to vector<16x128xf32>
    %147 = arith.mulf %146, %145 : vector<16x128xf32>
    %cst_99 = arith.constant 5.000000e-01 : f32
    %148 = vector.broadcast %cst_99 : f32 to vector<16x128xf32>
    %149 = arith.addf %147, %148 : vector<16x128xf32>
    %150 = arith.mulf %139, %123 : vector<16x128xf32>
    %151 = arith.mulf %131, %141 : vector<16x128xf32>
    %152 = arith.addf %150, %151 : vector<16x128xf32>
    %153 = math.tanh %152 : vector<16x128xf32>
    %154 = arith.mulf %149, %153 : vector<16x128xf32>
    %155 = arith.truncf %154 : vector<16x128xf32> to vector<16x128xbf16>
    %c0_100 = arith.constant 0 : index
    %c0_101 = arith.constant 0 : index
    %156 = vector.load %arg14[%c0_100, %c0_101] : memref<16x256xbf16, #tpu.memory_space<vmem>>, vector<16x128xbf16>
    tpu.vector_store %arg14[%c0_100, %c0_101], %155 {strides = array<i32>} : memref<16x256xbf16, #tpu.memory_space<vmem>>, vector<16x128xbf16>,
    %c1_102 = arith.constant 1 : index
    %c0_103 = arith.constant 0 : index
    %c0_104 = arith.constant 0 : index
    %157 = vector.load %arg2[%c1_102, %c0_103, %c0_104] : memref<2x16x128xf32, #tpu.memory_space<vmem>>, vector<1x16x128xf32>
    %158 = vector.shape_cast %157 : vector<1x16x128xf32> to vector<16x128xf32>
    %159 = arith.truncf %158 : vector<16x128xf32> to vector<16x128xbf16>
    %c0_105 = arith.constant 0 : index
    %c128_106 = arith.constant 128 : index
    %160 = vector.load %arg14[%c0_105, %c128_106] : memref<16x256xbf16, #tpu.memory_space<vmem>>, vector<16x128xbf16>
    tpu.vector_store %arg14[%c0_105, %c128_106], %159 {strides = array<i32>} : memref<16x256xbf16, #tpu.memory_space<vmem>>, vector<16x128xbf16>,
    %c0_107 = arith.constant 0 : index
    %c0_108 = arith.constant 0 : index
    %161 = vector.load %arg14[%c0_107, %c0_108] : memref<16x256xbf16, #tpu.memory_space<vmem>>, vector<16x256xbf16>
    %c0_109 = arith.constant 0 : index
    %c0_110 = arith.constant 0 : index
    %162 = vector.load %arg6[%c0_109, %c0_110] : memref<256x512xbf16, #tpu.memory_space<vmem>>, vector<256x512xbf16>
    %cst_111 = arith.constant dense<0.000000e+00> : vector<16x512xf32>
    %163 = tpu.matmul %161, %162, %cst_111 {dimension_numbers = #tpu.dot_dimension_numbers<[1], [0], [0], [1], [0, 0, 1, 1], [], []>} : vector<16x256xbf16>, vector<256x512xbf16>, vector<16x512xf32> -> vector<16x512xf32>
    %c0_112 = arith.constant 0 : index
    %c0_113 = arith.constant 0 : index
    %164 = vector.load %arg7[%c0_112, %c0_113] : memref<1x512xf32, #tpu.memory_space<vmem>>, vector<1x512xf32>
    %165 = vector.broadcast %164 : vector<1x512xf32> to vector<16x512xf32>
    %166 = arith.addf %163, %165 : vector<16x512xf32>
    %c1_114 = arith.constant 1 : index
    %c0_115 = arith.constant 0 : index
    %c0_116 = arith.constant 0 : index
    %167 = vector.load %arg3[%c1_114, %c0_115, %c0_116] : memref<2x16x128xf32, #tpu.memory_space<vmem>>, vector<1x16x128xf32>
    %168 = vector.shape_cast %167 : vector<1x16x128xf32> to vector<16x128xf32>
    %169 = vector.extract_strided_slice %166 {offsets = [0, 0], sizes = [16, 128], strides = [1, 1]} : vector<16x512xf32> to vector<16x128xf32>
    %cst_117 = arith.constant 5.000000e-01 : f32
    %170 = vector.broadcast %cst_117 : f32 to vector<16x128xf32>
    %171 = arith.mulf %170, %169 : vector<16x128xf32>
    %172 = math.tanh %171 : vector<16x128xf32>
    %cst_118 = arith.constant 5.000000e-01 : f32
    %173 = vector.broadcast %cst_118 : f32 to vector<16x128xf32>
    %174 = arith.mulf %173, %172 : vector<16x128xf32>
    %cst_119 = arith.constant 5.000000e-01 : f32
    %175 = vector.broadcast %cst_119 : f32 to vector<16x128xf32>
    %176 = arith.addf %174, %175 : vector<16x128xf32>
    %177 = vector.extract_strided_slice %166 {offsets = [0, 128], sizes = [16, 128], strides = [1, 1]} : vector<16x512xf32> to vector<16x128xf32>
    %cst_120 = arith.constant 5.000000e-01 : f32
    %178 = vector.broadcast %cst_120 : f32 to vector<16x128xf32>
    %179 = arith.mulf %178, %177 : vector<16x128xf32>
    %180 = math.tanh %179 : vector<16x128xf32>
    %cst_121 = arith.constant 5.000000e-01 : f32
    %181 = vector.broadcast %cst_121 : f32 to vector<16x128xf32>
    %182 = arith.mulf %181, %180 : vector<16x128xf32>
    %cst_122 = arith.constant 5.000000e-01 : f32
    %183 = vector.broadcast %cst_122 : f32 to vector<16x128xf32>
    %184 = arith.addf %182, %183 : vector<16x128xf32>
    %185 = vector.extract_strided_slice %166 {offsets = [0, 256], sizes = [16, 128], strides = [1, 1]} : vector<16x512xf32> to vector<16x128xf32>
    %186 = math.tanh %185 : vector<16x128xf32>
    %187 = vector.extract_strided_slice %166 {offsets = [0, 384], sizes = [16, 128], strides = [1, 1]} : vector<16x512xf32> to vector<16x128xf32>
    %cst_123 = arith.constant 5.000000e-01 : f32
    %188 = vector.broadcast %cst_123 : f32 to vector<16x128xf32>
    %189 = arith.mulf %188, %187 : vector<16x128xf32>
    %190 = math.tanh %189 : vector<16x128xf32>
    %cst_124 = arith.constant 5.000000e-01 : f32
    %191 = vector.broadcast %cst_124 : f32 to vector<16x128xf32>
    %192 = arith.mulf %191, %190 : vector<16x128xf32>
    %cst_125 = arith.constant 5.000000e-01 : f32
    %193 = vector.broadcast %cst_125 : f32 to vector<16x128xf32>
    %194 = arith.addf %192, %193 : vector<16x128xf32>
    %195 = arith.mulf %184, %168 : vector<16x128xf32>
    %196 = arith.mulf %176, %186 : vector<16x128xf32>
    %197 = arith.addf %195, %196 : vector<16x128xf32>
    %198 = math.tanh %197 : vector<16x128xf32>
    %199 = arith.mulf %194, %198 : vector<16x128xf32>
    %200 = arith.truncf %199 : vector<16x128xf32> to vector<16x128xbf16>
    %c0_126 = arith.constant 0 : index
    %c0_127 = arith.constant 0 : index
    %201 = vector.load %arg8[%c0_126, %c0_127] : memref<128x256xbf16, #tpu.memory_space<vmem>>, vector<128x256xbf16>
    %cst_128 = arith.constant dense<0.000000e+00> : vector<16x256xf32>
    %202 = tpu.matmul %200, %201, %cst_128 {dimension_numbers = #tpu.dot_dimension_numbers<[1], [0], [0], [1], [0, 0, 1, 1], [], []>} : vector<16x128xbf16>, vector<128x256xbf16>, vector<16x256xf32> -> vector<16x256xf32>
    %c0_129 = arith.constant 0 : index
    %c0_130 = arith.constant 0 : index
    %203 = vector.load %arg9[%c0_129, %c0_130] : memref<1x256xf32, #tpu.memory_space<vmem>>, vector<1x256xf32>
    %204 = vector.broadcast %203 : vector<1x256xf32> to vector<16x256xf32>
    %205 = arith.addf %202, %204 : vector<16x256xf32>
    %c0_131 = arith.constant 0 : index
    %c0_132 = arith.constant 0 : index
    %206 = vector.load %arg10[%c0_131, %c0_132] : memref<16x256xf32, #tpu.memory_space<vmem>>, vector<16x256xf32>
    tpu.vector_store %arg10[%c0_131, %c0_132], %205 {strides = array<i32>} : memref<16x256xf32, #tpu.memory_space<vmem>>, vector<16x256xf32>,
    %c0_133 = arith.constant 0 : index
    %c0_134 = arith.constant 0 : index
    %c0_135 = arith.constant 0 : index
    %207 = vector.load %arg11[%c0_133, %c0_134, %c0_135] : memref<2x16x128xf32, #tpu.memory_space<vmem>>, vector<1x16x128xf32>
    %208 = vector.shape_cast %207 : vector<1x16x128xf32> to vector<16x128xf32>
    %209 = vector.shape_cast %154 : vector<16x128xf32> to vector<1x16x128xf32>
    tpu.vector_store %arg11[%c0_133, %c0_134, %c0_135], %209 {strides = array<i32>} : memref<2x16x128xf32, #tpu.memory_space<vmem>>, vector<1x16x128xf32>,
    %c1_136 = arith.constant 1 : index
    %c0_137 = arith.constant 0 : index
    %c0_138 = arith.constant 0 : index
    %210 = vector.load %arg11[%c1_136, %c0_137, %c0_138] : memref<2x16x128xf32, #tpu.memory_space<vmem>>, vector<1x16x128xf32>
    %211 = vector.shape_cast %210 : vector<1x16x128xf32> to vector<16x128xf32>
    %212 = vector.shape_cast %199 : vector<16x128xf32> to vector<1x16x128xf32>
    tpu.vector_store %arg11[%c1_136, %c0_137, %c0_138], %212 {strides = array<i32>} : memref<2x16x128xf32, #tpu.memory_space<vmem>>, vector<1x16x128xf32>,
    %c0_139 = arith.constant 0 : index
    %c0_140 = arith.constant 0 : index
    %c0_141 = arith.constant 0 : index
    %213 = vector.load %arg12[%c0_139, %c0_140, %c0_141] : memref<2x16x128xf32, #tpu.memory_space<vmem>>, vector<1x16x128xf32>
    %214 = vector.shape_cast %213 : vector<1x16x128xf32> to vector<16x128xf32>
    %215 = vector.shape_cast %152 : vector<16x128xf32> to vector<1x16x128xf32>
    tpu.vector_store %arg12[%c0_139, %c0_140, %c0_141], %215 {strides = array<i32>} : memref<2x16x128xf32, #tpu.memory_space<vmem>>, vector<1x16x128xf32>,
    %c1_142 = arith.constant 1 : index
    %c0_143 = arith.constant 0 : index
    %c0_144 = arith.constant 0 : index
    %216 = vector.load %arg12[%c1_142, %c0_143, %c0_144] : memref<2x16x128xf32, #tpu.memory_space<vmem>>, vector<1x16x128xf32>
    %217 = vector.shape_cast %216 : vector<1x16x128xf32> to vector<16x128xf32>
    %218 = vector.shape_cast %197 : vector<16x128xf32> to vector<1x16x128xf32>
    tpu.vector_store %arg12[%c1_142, %c0_143, %c0_144], %218 {strides = array<i32>} : memref<2x16x128xf32, #tpu.memory_space<vmem>>, vector<1x16x128xf32>,
    return
  }
}

</mosaic_0001>

<llo_original>
// kernel: tpu_custom_call.1
$region0: #{tpu_custom_call.1}
  #allocation0 [shape = 'u32[]', space=smem, size = 0x4, offset = 0x4, fixed_abs, tag = 'smem constant byte address 0x4 - core index']
  #allocation1 [shape = 'u32[72,128]{1,0:T(1,128)}', space=vmem, size = 0x9000, scoped, tag = 'internal scratch']
  #allocation2 [shape = 'bf16[16,256]{1,0:T(8,128)(2,1)}', space=vmem, size = 0x2000, scoped, tag = 'scratch operand']
  #allocation3 [shape = 'bf16[16,256]{1,0:T(8,128)(2,1)}', space=vmem, size = 0x2000, scoped, tag = 'scratch operand']
  %s0 = inlined_call_operand.vmem [shape: s32[16], index: 0, kind: input, shape index: {}]
  %s1 = inlined_call_operand.hbm [shape: f32[50,128], index: 1, kind: input, shape index: {}]
  %s2 = inlined_call_operand.hbm [shape: f32[2,16,128], index: 2, kind: input, shape index: {}, may-alias: {2,11}]
  %s3 = inlined_call_operand.hbm [shape: f32[2,16,128], index: 3, kind: input, shape index: {}, may-alias: {3,12}]
  %s4 = inlined_call_operand.hbm [shape: bf16[256,512], index: 4, kind: input, shape index: {}]
  %s5 = inlined_call_operand.hbm [shape: f32[1,512], index: 5, kind: input, shape index: {}]
  %s6 = inlined_call_operand.hbm [shape: bf16[256,512], index: 6, kind: input, shape index: {}]
  %s7 = inlined_call_operand.hbm [shape: f32[1,512], index: 7, kind: input, shape index: {}]
  %s8 = inlined_call_operand.vmem [shape: bf16[128,256], index: 8, kind: input, shape index: {}]
  %s9 = inlined_call_operand.hbm [shape: f32[1,256], index: 9, kind: input, shape index: {}]
  %s10 = inlined_call_operand.hbm [shape: f32[16,256], index: 10, kind: output, shape index: {0}]
  %s11 = inlined_call_operand.hbm [shape: f32[2,16,128], index: 11, kind: output, shape index: {1}, may-alias: {2,11}]
  %s12 = inlined_call_operand.hbm [shape: f32[2,16,128], index: 12, kind: output, shape index: {2}, may-alias: {3,12}]
  %13 = xla_tuple %s10, %s11, %s12
  %s14 = sld [smem:[#allocation0]]
  $region102: #{tpu_custom_call.1} parent=0
    _
  %s16 = ssub.s32 1, %s14
  %s17 = scalar_select 0, %s16, %s14
  $region1: #{tpu_custom_call.1} parent=0
    #allocation4 [shape = 'u8[512]{0}', space=smem, size = 0x200, scoped, tag = 'input window, operand 0, single buffered']
    #allocation5 [shape = 's32[1]{0}', space=sflag, size = 0x4, scoped, tag = 'scoped memory for tpu_custom_call.1']
    #allocation6 [shape = 's32[1]{0}', space=sflag, size = 0x4, scoped, tag = 'scoped memory for tpu_custom_call.1']
    #allocation7 [shape = 's32[1]{0}', space=sflag, size = 0x4, scoped, tag = 'scoped memory for tpu_custom_call.1']
    #allocation8 [shape = 'u8[28672]{0}', space=vmem, size = 0x7000, scoped, tag = 'input window, operand 1, single buffered']
    #allocation9 [shape = 'u8[16384]{0}', space=vmem, size = 0x4000, scoped, tag = 'input window, operand 2, single buffered']
    #allocation10 [shape = 's32[1]{0}', space=sflag, size = 0x4, scoped, tag = 'scoped memory for tpu_custom_call.1']
    #allocation11 [shape = 'u8[16384]{0}', space=vmem, size = 0x4000, scoped, tag = 'input window, operand 3, single buffered']
    #allocation12 [shape = 'u8[262144]{0}', space=vmem, size = 0x40000, scoped, tag = 'input window, operand 4, single buffered']
    #allocation13 [shape = 's32[1]{0}', space=sflag, size = 0x4, scoped, tag = 'scoped memory for tpu_custom_call.1']
    #allocation14 [shape = 'u8[2048]{0}', space=vmem, size = 0x800, scoped, tag = 'input window, operand 5, single buffered']
    #allocation15 [shape = 'u8[262144]{0}', space=vmem, size = 0x40000, scoped, tag = 'input window, operand 6, single buffered']
    #allocation16 [shape = 's32[1]{0}', space=sflag, size = 0x4, scoped, tag = 'scoped memory for tpu_custom_call.1']
    #allocation17 [shape = 'u8[2048]{0}', space=vmem, size = 0x800, scoped, tag = 'input window, operand 7, single buffered']
    #allocation18 [shape = 'u8[1024]{0}', space=vmem, size = 0x400, scoped, tag = 'input window, operand 9, single buffered']
    #allocation19 [shape = 's32[1]{0}', space=sflag, size = 0x4, scoped, tag = 'scoped memory for tpu_custom_call.1']
    #allocation20 [shape = 'u8[16384]{0}', space=vmem, size = 0x4000, scoped, tag = 'output window, operand 0, single buffered']
    #allocation21 [shape = 'u8[16384]{0}', space=vmem, size = 0x4000, scoped, tag = 'output window, operand 1, single buffered']
    #allocation22 [shape = 's32[1]{0}', space=sflag, size = 0x4, scoped, tag = 'scoped memory for tpu_custom_call.1']
    #allocation23 [shape = 'u8[16384]{0}', space=vmem, size = 0x4000, scoped, tag = 'output window, operand 2, single buffered']
    %18 = vsyncpa [#allocation7], 0
    %19 = vsyncpa [#allocation5], 0
    %20 = vsyncpa [#allocation10], 0
    %21 = vsyncpa [#allocation13], 0
    %22 = vsyncpa [#allocation16], 0
    %23 = vsyncpa [#allocation19], 0
    %24 = vsyncpa [#allocation6], 0
    %25 = vsyncpa [#allocation22], 0
    // Predicated region
    $region2: #{tpu_custom_call.1} parent=1 // pred_check
      _
    $region3: #{tpu_custom_call.1} parent=1 // pred_check_branch
      %27 = sbr.rel (0) target = $region5
    $region4: #{tpu_custom_call.1} parent=1 // pred_region
      %29 = vsyncadd [#allocation7], 0
      %s31 = sshll.u32 %s0, 4
      %s32 = int_to_ptr.vmem [resolvable:$true] %s31
      %34 = dma.vmem_to_smem %s32, 16, [#allocation4], [#allocation7]
    $region5: #{tpu_custom_call.1} parent=1 // pred_fallthru
      _
    // Predicated region
    $region6: #{tpu_custom_call.1} parent=1 // pred_check
      _
    $region7: #{tpu_custom_call.1} parent=1 // pred_check_branch
      %36 = sbr.rel (0) target = $region9
    $region8: #{tpu_custom_call.1} parent=1 // pred_region
      %38 = vsyncadd [#allocation5], 0
      %s39 = sshll.u32 %s1, 4
      %s40 = int_to_ptr.hbm [resolvable:$true] %s39
      %s41 = sshll.u32 [#allocation8], 4
      %s42 = int_to_ptr.vmem [resolvable:$true] %s41
      %47 = dma.hbm_to_vmem [thread:$0]  %s40, 896, %s42, [#allocation5], 128, 128, 8
    $region9: #{tpu_custom_call.1} parent=1 // pred_fallthru
      _
    // Predicated region
    $region10: #{tpu_custom_call.1} parent=1 // pred_check
      _
    $region11: #{tpu_custom_call.1} parent=1 // pred_check_branch
      %49 = sbr.rel (0) target = $region13
    $region12: #{tpu_custom_call.1} parent=1 // pred_region
      %51 = vsyncadd [#allocation10], 0
      %s52 = sshll.u32 %s2, 4
      %s53 = int_to_ptr.hbm [resolvable:$true] %s52
      %s54 = sshll.u32 [#allocation9], 4
      %s55 = int_to_ptr.vmem [resolvable:$true] %s54
      %60 = dma.hbm_to_vmem [thread:$0]  %s53, 512, %s55, [#allocation10], 128, 128, 8
    $region13: #{tpu_custom_call.1} parent=1 // pred_fallthru
      _
    // Predicated region
    $region14: #{tpu_custom_call.1} parent=1 // pred_check
      _
    $region15: #{tpu_custom_call.1} parent=1 // pred_check_branch
      %62 = sbr.rel (0) target = $region17
    $region16: #{tpu_custom_call.1} parent=1 // pred_region
      %64 = vsyncadd [#allocation10], 0
      %s65 = sshll.u32 %s3, 4
      %s66 = int_to_ptr.hbm [resolvable:$true] %s65
      %s67 = sshll.u32 [#allocation11], 4
      %s68 = int_to_ptr.vmem [resolvable:$true] %s67
      %73 = dma.hbm_to_vmem [thread:$0]  %s66, 512, %s68, [#allocation10], 128, 128, 8
    $region17: #{tpu_custom_call.1} parent=1 // pred_fallthru
      _
    // Predicated region
    $region18: #{tpu_custom_call.1} parent=1 // pred_check
      _
    $region19: #{tpu_custom_call.1} parent=1 // pred_check_branch
      %75 = sbr.rel (0) target = $region21
    $region20: #{tpu_custom_call.1} parent=1 // pred_region
      %77 = vsyncadd [#allocation13], 0
      %s78 = sshll.u32 %s4, 4
      %s79 = int_to_ptr.hbm [resolvable:$true] %s78
      %s80 = sshll.u32 [#allocation12], 4
      %s81 = int_to_ptr.vmem [resolvable:$true] %s80
      %86 = dma.hbm_to_vmem [thread:$0]  %s79, 8192, %s81, [#allocation13], 256, 256, 16
    $region21: #{tpu_custom_call.1} parent=1 // pred_fallthru
      _
    // Predicated region
    $region22: #{tpu_custom_call.1} parent=1 // pred_check
      _
    $region23: #{tpu_custom_call.1} parent=1 // pred_check_branch
      %88 = sbr.rel (0) target = $region25
    $region24: #{tpu_custom_call.1} parent=1 // pred_region
      %90 = vsyncadd [#allocation13], 0
      %s92 = sshll.u32 %s5, 4
      %s93 = int_to_ptr.hbm [resolvable:$true] %s92
      %s94 = sshll.u32 [#allocation14], 4
      %s95 = int_to_ptr.vmem [resolvable:$true] %s94
      %97 = dma.hbm_to_vmem [thread:$0]  %s93, 64, %s95, [#allocation13]
    $region25: #{tpu_custom_call.1} parent=1 // pred_fallthru
      _
    // Predicated region
    $region26: #{tpu_custom_call.1} parent=1 // pred_check
      _
    $region27: #{tpu_custom_call.1} parent=1 // pred_check_branch
      %99 = sbr.rel (0) target = $region29
    $region28: #{tpu_custom_call.1} parent=1 // pred_region
      %101 = vsyncadd [#allocation16], 0
      %s102 = sshll.u32 %s6, 4
      %s103 = int_to_ptr.hbm [resolvable:$true] %s102
      %s104 = sshll.u32 [#allocation15], 4
      %s105 = int_to_ptr.vmem [resolvable:$true] %s104
      %110 = dma.hbm_to_vmem [thread:$0]  %s103, 8192, %s105, [#allocation16], 256, 256, 16
    $region29: #{tpu_custom_call.1} parent=1 // pred_fallthru
      _
    // Predicated region
    $region30: #{tpu_custom_call.1} parent=1 // pred_check
      _
    $region31: #{tpu_custom_call.1} parent=1 // pred_check_branch
      %112 = sbr.rel (0) target = $region33
    $region32: #{tpu_custom_call.1} parent=1 // pred_region
      %114 = vsyncadd [#allocation16], 0
      %s116 = sshll.u32 %s7, 4
      %s117 = int_to_ptr.hbm [resolvable:$true] %s116
      %s118 = sshll.u32 [#allocation17], 4
      %s119 = int_to_ptr.vmem [resolvable:$true] %s118
      %121 = dma.hbm_to_vmem [thread:$0]  %s117, 64, %s119, [#allocation16]
    $region33: #{tpu_custom_call.1} parent=1 // pred_fallthru
      _
    // Predicated region
    $region34: #{tpu_custom_call.1} parent=1 // pred_check
      _
    $region35: #{tpu_custom_call.1} parent=1 // pred_check_branch
      %123 = sbr.rel (0) target = $region37
    $region36: #{tpu_custom_call.1} parent=1 // pred_region
      _
    $region37: #{tpu_custom_call.1} parent=1 // pred_fallthru
      _
    // Predicated region
    $region38: #{tpu_custom_call.1} parent=1 // pred_check
      _
    $region39: #{tpu_custom_call.1} parent=1 // pred_check_branch
      %125 = sbr.rel (0) target = $region41
    $region40: #{tpu_custom_call.1} parent=1 // pred_region
      %127 = vsyncadd [#allocation19], 0
      %s129 = sshll.u32 %s9, 4
      %s130 = int_to_ptr.hbm [resolvable:$true] %s129
      %s131 = sshll.u32 [#allocation18], 4
      %s132 = int_to_ptr.vmem [resolvable:$true] %s131
      %134 = dma.hbm_to_vmem [thread:$0]  %s130, 32, %s132, [#allocation19]
    $region41: #{tpu_custom_call.1} parent=1 // pred_fallthru
      _
    // Predicated region
    $region42: #{tpu_custom_call.1} parent=1 // pred_check
      _
    $region43: #{tpu_custom_call.1} parent=1 // pred_check_branch
      %136 = sbr.rel (0) target = $region45
    $region44: #{tpu_custom_call.1} parent=1 // pred_region
      %138 = dma.done [#allocation7], 16
    $region45: #{tpu_custom_call.1} parent=1 // pred_fallthru
      _
    // Predicated region
    $region46: #{tpu_custom_call.1} parent=1 // pred_check
      _
    $region47: #{tpu_custom_call.1} parent=1 // pred_check_branch
      %140 = sbr.rel (0) target = $region49
    $region48: #{tpu_custom_call.1} parent=1 // pred_region
      %142 = dma.done [#allocation5], 896
    $region49: #{tpu_custom_call.1} parent=1 // pred_fallthru
      _
    // Predicated region
    $region50: #{tpu_custom_call.1} parent=1 // pred_check
      _
    $region51: #{tpu_custom_call.1} parent=1 // pred_check_branch
      %144 = sbr.rel (0) target = $region53
    $region52: #{tpu_custom_call.1} parent=1 // pred_region
      %146 = dma.done [#allocation10], 512
    $region53: #{tpu_custom_call.1} parent=1 // pred_fallthru
      _
    // Predicated region
    $region54: #{tpu_custom_call.1} parent=1 // pred_check
      _
    $region55: #{tpu_custom_call.1} parent=1 // pred_check_branch
      %148 = sbr.rel (0) target = $region57
    $region56: #{tpu_custom_call.1} parent=1 // pred_region
      %150 = dma.done [#allocation10], 512
    $region57: #{tpu_custom_call.1} parent=1 // pred_fallthru
      _
    // Predicated region
    $region58: #{tpu_custom_call.1} parent=1 // pred_check
      _
    $region59: #{tpu_custom_call.1} parent=1 // pred_check_branch
      %152 = sbr.rel (0) target = $region61
    $region60: #{tpu_custom_call.1} parent=1 // pred_region
      %154 = dma.done [#allocation13], 8192
    $region61: #{tpu_custom_call.1} parent=1 // pred_fallthru
      _
    // Predicated region
    $region62: #{tpu_custom_call.1} parent=1 // pred_check
      _
    $region63: #{tpu_custom_call.1} parent=1 // pred_check_branch
      %156 = sbr.rel (0) target = $region65
    $region64: #{tpu_custom_call.1} parent=1 // pred_region
      %158 = dma.done [#allocation13], 64
    $region65: #{tpu_custom_call.1} parent=1 // pred_fallthru
      _
    // Predicated region
    $region66: #{tpu_custom_call.1} parent=1 // pred_check
      _
    $region67: #{tpu_custom_call.1} parent=1 // pred_check_branch
      %160 = sbr.rel (0) target = $region69
    $region68: #{tpu_custom_call.1} parent=1 // pred_region
      %162 = dma.done [#allocation16], 8192
    $region69: #{tpu_custom_call.1} parent=1 // pred_fallthru
      _
    // Predicated region
    $region70: #{tpu_custom_call.1} parent=1 // pred_check
      _
    $region71: #{tpu_custom_call.1} parent=1 // pred_check_branch
      %164 = sbr.rel (0) target = $region73
    $region72: #{tpu_custom_call.1} parent=1 // pred_region
      %166 = dma.done [#allocation16], 64
    $region73: #{tpu_custom_call.1} parent=1 // pred_fallthru
      _
    // Predicated region
    $region74: #{tpu_custom_call.1} parent=1 // pred_check
      _
    $region75: #{tpu_custom_call.1} parent=1 // pred_check_branch
      %168 = sbr.rel (0) target = $region77
    $region76: #{tpu_custom_call.1} parent=1 // pred_region
      %170 = dma.done [#allocation19], 32
    $region77: #{tpu_custom_call.1} parent=1 // pred_fallthru
      _
    %171 = sfence
    %s172 = sld [smem:[#allocation4]]
    %p173 = scmp.gt.s32.totalorder %s172, 0
    %s174 = scalar_select %p173, %s172, 0
    %p175 = scmp.lt.s32.totalorder %s174, 49
    %s176 = scalar_select %p175, %s174, 49
    %s177 = scalar_lea.vmem [#allocation8], %s176
    %v178 = vld [vmem:[%s177] sm:$0x1]
    %v179 = vpack.c.bf16 %v178, %v178
    %vm180 = vcmask 1040384
    %vm181 = vsmask.f32 256
    %vm182 = vmand %vm180, %vm181
    %v183 = vld [vmem:[#allocation2] sm:$0x1]
    %v184 = vsel %vm182, %v179, %v183
    %185 = vst [vmem:[#allocation2] sm:$0x1] %v184
    %s186 = sld [smem:[#allocation4 + $0x1]]
    %p187 = scmp.gt.s32.totalorder %s186, 0
    %s188 = scalar_select %p187, %s186, 0
    %p189 = scmp.lt.s32.totalorder %s188, 49
    %s190 = scalar_select %p189, %s188, 49
    %s191 = scalar_lea.vmem [#allocation8], %s190
    %v192 = vld [vmem:[%s191] sm:$0x1]
    %v193 = vpack.c.bf16 %v192, %v192
    %v195 = vshll.u32 %v193, 16
    %vm198 = vsmask.f32 7938
    %vm199 = vmand %vm180, %vm198
    %v200 = vld [vmem:[#allocation2] sm:$0x1]
    %v201 = vsel %vm199, %v195, %v200
    %202 = vst [vmem:[#allocation2] sm:$0x1] %v201
    %s203 = sld [smem:[#allocation4 + $0x2]]
    %p204 = scmp.gt.s32.totalorder %s203, 0
    %s205 = scalar_select %p204, %s203, 0
    %p206 = scmp.lt.s32.totalorder %s205, 49
    %s207 = scalar_select %p206, %s205, 49
    %s208 = scalar_lea.vmem [#allocation8], %s207
    %v209 = vld [vmem:[%s208] sm:$0x1]
    %v210 = vpack.c.bf16 %v209, %v209
    %v212 = vrot.slane %v210, 7
    %vm214 = vcmask 1041409
    %vm215 = vsmask.f32 1280
    %vm216 = vmand %vm214, %vm215
    %v217 = vld [vmem:[#allocation2] sm:$0x2]
    %v218 = vsel %vm216, %v212, %v217
    %219 = vst [vmem:[#allocation2] sm:$0x2] %v218
    %s220 = sld [smem:[#allocation4 + $0x3]]
    %p221 = scmp.gt.s32.totalorder %s220, 0
    %s222 = scalar_select %p221, %s220, 0
    %p223 = scmp.lt.s32.totalorder %s222, 49
    %s224 = scalar_select %p223, %s222, 49
    %s225 = scalar_lea.vmem [#allocation8], %s224
    %v226 = vld [vmem:[%s225] sm:$0x1]
    %v227 = vpack.c.bf16 %v226, %v226
    %v229 = vshll.u32 %v227, 16
    %v231 = vrot.slane %v229, 7
    %vm233 = vsmask.f32 7942
    %vm234 = vmand %vm214, %vm233
    %v235 = vld [vmem:[#allocation2] sm:$0x2]
    %v236 = vsel %vm234, %v231, %v235
    %237 = vst [vmem:[#allocation2] sm:$0x2] %v236
    %s238 = sld [smem:[#allocation4 + $0x4]]
    %p239 = scmp.gt.s32.totalorder %s238, 0
    %s240 = scalar_select %p239, %s238, 0
    %p241 = scmp.lt.s32.totalorder %s240, 49
    %s242 = scalar_select %p241, %s240, 49
    %s243 = scalar_lea.vmem [#allocation8], %s242
    %v244 = vld [vmem:[%s243] sm:$0x1]
    %v245 = vpack.c.bf16 %v244, %v244
    %v247 = vrot.slane %v245, 6
    %vm249 = vcmask 1042434
    %vm250 = vsmask.f32 2304
    %vm251 = vmand %vm249, %vm250
    %v252 = vld [vmem:[#allocation2] sm:$0x4]
    %v253 = vsel %vm251, %v247, %v252
    %254 = vst [vmem:[#allocation2] sm:$0x4] %v253
    %s255 = sld [smem:[#allocation4 + $0x5]]
    %p256 = scmp.gt.s32.totalorder %s255, 0
    %s257 = scalar_select %p256, %s255, 0
    %p258 = scmp.lt.s32.totalorder %s257, 49
    %s259 = scalar_select %p258, %s257, 49
    %s260 = scalar_lea.vmem [#allocation8], %s259
    %v261 = vld [vmem:[%s260] sm:$0x1]
    %v262 = vpack.c.bf16 %v261, %v261
    %v264 = vshll.u32 %v262, 16
    %v266 = vrot.slane %v264, 6
    %vm268 = vsmask.f32 7946
    %vm269 = vmand %vm249, %vm268
    %v270 = vld [vmem:[#allocation2] sm:$0x4]
    %v271 = vsel %vm269, %v266, %v270
    %272 = vst [vmem:[#allocation2] sm:$0x4] %v271
    %s273 = sld [smem:[#allocation4 + $0x6]]
    %p274 = scmp.gt.s32.totalorder %s273, 0
    %s275 = scalar_select %p274, %s273, 0
    %p276 = scmp.lt.s32.totalorder %s275, 49
    %s277 = scalar_select %p276, %s275, 49
    %s278 = scalar_lea.vmem [#allocation8], %s277
    %v279 = vld [vmem:[%s278] sm:$0x1]
    %v280 = vpack.c.bf16 %v279, %v279
    %v282 = vrot.slane %v280, 5
    %vm284 = vcmask 1043459
    %vm285 = vsmask.f32 3328
    %vm286 = vmand %vm284, %vm285
    %v287 = vld [vmem:[#allocation2] sm:$0x8]
    %v288 = vsel %vm286, %v282, %v287
    %289 = vst [vmem:[#allocation2] sm:$0x8] %v288
    %s290 = sld [smem:[#allocation4 + $0x7]]
    %p291 = scmp.gt.s32.totalorder %s290, 0
    %s292 = scalar_select %p291, %s290, 0
    %p293 = scmp.lt.s32.totalorder %s292, 49
    %s294 = scalar_select %p293, %s292, 49
    %s295 = scalar_lea.vmem [#allocation8], %s294
    %v296 = vld [vmem:[%s295] sm:$0x1]
    %v297 = vpack.c.bf16 %v296, %v296
    %v299 = vshll.u32 %v297, 16
    %v301 = vrot.slane %v299, 5
    %vm303 = vsmask.f32 7950
    %vm304 = vmand %vm284, %vm303
    %v305 = vld [vmem:[#allocation2] sm:$0x8]
    %v306 = vsel %vm304, %v301, %v305
    %307 = vst [vmem:[#allocation2] sm:$0x8] %v306
    %s308 = sld [smem:[#allocation4 + $0x8]]
    %p309 = scmp.gt.s32.totalorder %s308, 0
    %s310 = scalar_select %p309, %s308, 0
    %p311 = scmp.lt.s32.totalorder %s310, 49
    %s312 = scalar_select %p311, %s310, 49
    %s313 = scalar_lea.vmem [#allocation8], %s312
    %v314 = vld [vmem:[%s313] sm:$0x1]
    %v315 = vpack.c.bf16 %v314, %v314
    %v316 = vld [vmem:[#allocation2 + $0x8] sm:$0x1]
    %v317 = vsel %vm182, %v315, %v316
    %318 = vst [vmem:[#allocation2 + $0x8] sm:$0x1] %v317
    %s319 = sld [smem:[#allocation4 + $0x9]]
    %p320 = scmp.gt.s32.totalorder %s319, 0
    %s321 = scalar_select %p320, %s319, 0
    %p322 = scmp.lt.s32.totalorder %s321, 49
    %s323 = scalar_select %p322, %s321, 49
    %s324 = scalar_lea.vmem [#allocation8], %s323
    %v325 = vld [vmem:[%s324] sm:$0x1]
    %v326 = vpack.c.bf16 %v325, %v325
    %v328 = vshll.u32 %v326, 16
    %v331 = vld [vmem:[#allocation2 + $0x8] sm:$0x1]
    %v332 = vsel %vm199, %v328, %v331
    %333 = vst [vmem:[#allocation2 + $0x8] sm:$0x1] %v332
    %s334 = sld [smem:[#allocation4 + $0xa]]
    %p335 = scmp.gt.s32.totalorder %s334, 0
    %s336 = scalar_select %p335, %s334, 0
    %p337 = scmp.lt.s32.totalorder %s336, 49
    %s338 = scalar_select %p337, %s336, 49
    %s339 = scalar_lea.vmem [#allocation8], %s338
    %v340 = vld [vmem:[%s339] sm:$0x1]
    %v341 = vpack.c.bf16 %v340, %v340
    %v343 = vrot.slane %v341, 7
    %v345 = vld [vmem:[#allocation2 + $0x8] sm:$0x2]
    %v346 = vsel %vm216, %v343, %v345
    %347 = vst [vmem:[#allocation2 + $0x8] sm:$0x2] %v346
    %s348 = sld [smem:[#allocation4 + $0xb]]
    %p349 = scmp.gt.s32.totalorder %s348, 0
    %s350 = scalar_select %p349, %s348, 0
    %p351 = scmp.lt.s32.totalorder %s350, 49
    %s352 = scalar_select %p351, %s350, 49
    %s353 = scalar_lea.vmem [#allocation8], %s352
    %v354 = vld [vmem:[%s353] sm:$0x1]
    %v355 = vpack.c.bf16 %v354, %v354
    %v357 = vshll.u32 %v355, 16
    %v359 = vrot.slane %v357, 7
    %v361 = vld [vmem:[#allocation2 + $0x8] sm:$0x2]
    %v362 = vsel %vm234, %v359, %v361
    %363 = vst [vmem:[#allocation2 + $0x8] sm:$0x2] %v362
    %s364 = sld [smem:[#allocation4 + $0xc]]
    %p365 = scmp.gt.s32.totalorder %s364, 0
    %s366 = scalar_select %p365, %s364, 0
    %p367 = scmp.lt.s32.totalorder %s366, 49
    %s368 = scalar_select %p367, %s366, 49
    %s369 = scalar_lea.vmem [#allocation8], %s368
    %v370 = vld [vmem:[%s369] sm:$0x1]
    %v371 = vpack.c.bf16 %v370, %v370
    %v373 = vrot.slane %v371, 6
    %v375 = vld [vmem:[#allocation2 + $0x8] sm:$0x4]
    %v376 = vsel %vm251, %v373, %v375
    %377 = vst [vmem:[#allocation2 + $0x8] sm:$0x4] %v376
    %s378 = sld [smem:[#allocation4 + $0xd]]
    %p379 = scmp.gt.s32.totalorder %s378, 0
    %s380 = scalar_select %p379, %s378, 0
    %p381 = scmp.lt.s32.totalorder %s380, 49
    %s382 = scalar_select %p381, %s380, 49
    %s383 = scalar_lea.vmem [#allocation8], %s382
    %v384 = vld [vmem:[%s383] sm:$0x1]
    %v385 = vpack.c.bf16 %v384, %v384
    %v387 = vshll.u32 %v385, 16
    %v389 = vrot.slane %v387, 6
    %v391 = vld [vmem:[#allocation2 + $0x8] sm:$0x4]
    %v392 = vsel %vm269, %v389, %v391
    %393 = vst [vmem:[#allocation2 + $0x8] sm:$0x4] %v392
    %s394 = sld [smem:[#allocation4 + $0xe]]
    %p395 = scmp.gt.s32.totalorder %s394, 0
    %s396 = scalar_select %p395, %s394, 0
    %p397 = scmp.lt.s32.totalorder %s396, 49
    %s398 = scalar_select %p397, %s396, 49
    %s399 = scalar_lea.vmem [#allocation8], %s398
    %v400 = vld [vmem:[%s399] sm:$0x1]
    %v401 = vpack.c.bf16 %v400, %v400
    %v403 = vrot.slane %v401, 5
    %v405 = vld [vmem:[#allocation2 + $0x8] sm:$0x8]
    %v406 = vsel %vm286, %v403, %v405
    %407 = vst [vmem:[#allocation2 + $0x8] sm:$0x8] %v406
    %s408 = sld [smem:[#allocation4 + $0xf]]
    %p409 = scmp.gt.s32.totalorder %s408, 0
    %s410 = scalar_select %p409, %s408, 0
    %p411 = scmp.lt.s32.totalorder %s410, 49
    %s412 = scalar_select %p411, %s410, 49
    %s413 = scalar_lea.vmem [#allocation8], %s412
    %v414 = vld [vmem:[%s413] sm:$0x1]
    %v415 = vpack.c.bf16 %v414, %v414
    %v417 = vshll.u32 %v415, 16
    %v419 = vrot.slane %v417, 5
    %v421 = vld [vmem:[#allocation2 + $0x8] sm:$0x8]
    %v422 = vsel %vm304, %v419, %v421
    %423 = vst [vmem:[#allocation2 + $0x8] sm:$0x8] %v422
    %v424 = vld [vmem:[#allocation9] sm:$0xff]
    %v425 = vld [vmem:[#allocation9 + $0x8] sm:$0xff]
    %v426 = vpack.c.bf16 %v424, %v424
    %v427 = vpack.c.bf16 %v425, %v425
    %428 = vst [vmem:[#allocation2 + $0x4] sm:$0xf] %v426
    %429 = vst [vmem:[#allocation2 + $0xc] sm:$0xf] %v427
    %v430 = vld [vmem:[#allocation2] sm:$0xff]
    %v431 = vld [vmem:[#allocation2 + $0x8] sm:$0xff]
    %v432 = vld [vmem:[#allocation12] sm:$0xff]
    %v433 = vld [vmem:[#allocation12 + $0x8] sm:$0xff]
    %v434 = vld [vmem:[#allocation12 + $0x10] sm:$0xff]
    %v435 = vld [vmem:[#allocation12 + $0x18] sm:$0xff]
    %v436 = vld [vmem:[#allocation12 + $0x20] sm:$0xff]
    %v437 = vld [vmem:[#allocation12 + $0x28] sm:$0xff]
    %v438 = vld [vmem:[#allocation12 + $0x30] sm:$0xff]
    %v439 = vld [vmem:[#allocation12 + $0x38] sm:$0xff]
    %v440 = vld [vmem:[#allocation12 + $0x40] sm:$0xff]
    %v441 = vld [vmem:[#allocation12 + $0x48] sm:$0xff]
    %v442 = vld [vmem:[#allocation12 + $0x50] sm:$0xff]
    %v443 = vld [vmem:[#allocation12 + $0x58] sm:$0xff]
    %v444 = vld [vmem:[#allocation12 + $0x60] sm:$0xff]
    %v445 = vld [vmem:[#allocation12 + $0x68] sm:$0xff]
    %v446 = vld [vmem:[#allocation12 + $0x70] sm:$0xff]
    %v447 = vld [vmem:[#allocation12 + $0x78] sm:$0xff]
    %v448 = vld [vmem:[#allocation12 + $0x80] sm:$0xff]
    %v449 = vld [vmem:[#allocation12 + $0x88] sm:$0xff]
    %v450 = vld [vmem:[#allocation12 + $0x90] sm:$0xff]
    %v451 = vld [vmem:[#allocation12 + $0x98] sm:$0xff]
    %v452 = vld [vmem:[#allocation12 + $0xa0] sm:$0xff]
    %v453 = vld [vmem:[#allocation12 + $0xa8] sm:$0xff]
    %v454 = vld [vmem:[#allocation12 + $0xb0] sm:$0xff]
    %v455 = vld [vmem:[#allocation12 + $0xb8] sm:$0xff]
    %v456 = vld [vmem:[#allocation12 + $0xc0] sm:$0xff]
    %v457 = vld [vmem:[#allocation12 + $0xc8] sm:$0xff]
    %v458 = vld [vmem:[#allocation12 + $0xd0] sm:$0xff]
    %v459 = vld [vmem:[#allocation12 + $0xd8] sm:$0xff]
    %v460 = vld [vmem:[#allocation12 + $0xe0] sm:$0xff]
    %v461 = vld [vmem:[#allocation12 + $0xe8] sm:$0xff]
    %v462 = vld [vmem:[#allocation12 + $0xf0] sm:$0xff]
    %v463 = vld [vmem:[#allocation12 + $0xf8] sm:$0xff]
    %v464 = vld [vmem:[#allocation12 + $0x100] sm:$0xff]
    %v465 = vld [vmem:[#allocation12 + $0x108] sm:$0xff]
    %v466 = vld [vmem:[#allocation12 + $0x110] sm:$0xff]
    %v467 = vld [vmem:[#allocation12 + $0x118] sm:$0xff]
    %v468 = vld [vmem:[#allocation12 + $0x120] sm:$0xff]
    %v469 = vld [vmem:[#allocation12 + $0x128] sm:$0xff]
    %v470 = vld [vmem:[#allocation12 + $0x130] sm:$0xff]
    %v471 = vld [vmem:[#allocation12 + $0x138] sm:$0xff]
    %v472 = vld [vmem:[#allocation12 + $0x140] sm:$0xff]
    %v473 = vld [vmem:[#allocation12 + $0x148] sm:$0xff]
    %v474 = vld [vmem:[#allocation12 + $0x150] sm:$0xff]
    %v475 = vld [vmem:[#allocation12 + $0x158] sm:$0xff]
    %v476 = vld [vmem:[#allocation12 + $0x160] sm:$0xff]
    %v477 = vld [vmem:[#allocation12 + $0x168] sm:$0xff]
    %v478 = vld [vmem:[#allocation12 + $0x170] sm:$0xff]
    %v479 = vld [vmem:[#allocation12 + $0x178] sm:$0xff]
    %v480 = vld [vmem:[#allocation12 + $0x180] sm:$0xff]
    %v481 = vld [vmem:[#allocation12 + $0x188] sm:$0xff]
    %v482 = vld [vmem:[#allocation12 + $0x190] sm:$0xff]
    %v483 = vld [vmem:[#allocation12 + $0x198] sm:$0xff]
    %v484 = vld [vmem:[#allocation12 + $0x1a0] sm:$0xff]
    %v485 = vld [vmem:[#allocation12 + $0x1a8] sm:$0xff]
    %v486 = vld [vmem:[#allocation12 + $0x1b0] sm:$0xff]
    %v487 = vld [vmem:[#allocation12 + $0x1b8] sm:$0xff]
    %v488 = vld [vmem:[#allocation12 + $0x1c0] sm:$0xff]
    %v489 = vld [vmem:[#allocation12 + $0x1c8] sm:$0xff]
    %v490 = vld [vmem:[#allocation12 + $0x1d0] sm:$0xff]
    %v491 = vld [vmem:[#allocation12 + $0x1d8] sm:$0xff]
    %v492 = vld [vmem:[#allocation12 + $0x1e0] sm:$0xff]
    %v493 = vld [vmem:[#allocation12 + $0x1e8] sm:$0xff]
    %v494 = vld [vmem:[#allocation12 + $0x1f0] sm:$0xff]
    %v495 = vld [vmem:[#allocation12 + $0x1f8] sm:$0xff]
    %v496 = vld [vmem:[#allocation14] sm:$0xf]
    %v498 = vperm.slane %v496, 0
    %v499 = vperm.slane %v496, 1
    %v500 = vperm.slane %v496, 2
    %v501 = vperm.slane %v496, 3
    %v508 = vunpack.c.l.b16 %v430
    %v509 = vunpack.c.h.b16 %v430
    %v510 = vunpack.c.l.b16 %v431
    %v511 = vunpack.c.h.b16 %v431
    %v512 = vpack.c.b16 %v510, %v508
    %v513 = vpack.c.b16 %v511, %v509
    %v580 = vunpack.c.l.b16 %v432
    %v581 = vunpack.c.h.b16 %v432
    %v582 = vunpack.c.l.b16 %v433
    %v583 = vunpack.c.h.b16 %v433
    %v584 = vunpack.c.l.b16 %v434
    %v585 = vunpack.c.h.b16 %v434
    %v586 = vunpack.c.l.b16 %v435
    %v587 = vunpack.c.h.b16 %v435
    %v588 = vunpack.c.l.b16 %v436
    %v589 = vunpack.c.h.b16 %v436
    %v590 = vunpack.c.l.b16 %v437
    %v591 = vunpack.c.h.b16 %v437
    %v592 = vunpack.c.l.b16 %v438
    %v593 = vunpack.c.h.b16 %v438
    %v594 = vunpack.c.l.b16 %v439
    %v595 = vunpack.c.h.b16 %v439
    %v596 = vunpack.c.l.b16 %v440
    %v597 = vunpack.c.h.b16 %v440
    %v598 = vunpack.c.l.b16 %v441
    %v599 = vunpack.c.h.b16 %v441
    %v600 = vunpack.c.l.b16 %v442
    %v601 = vunpack.c.h.b16 %v442
    %v602 = vunpack.c.l.b16 %v443
    %v603 = vunpack.c.h.b16 %v443
    %v604 = vunpack.c.l.b16 %v444
    %v605 = vunpack.c.h.b16 %v444
    %v606 = vunpack.c.l.b16 %v445
    %v607 = vunpack.c.h.b16 %v445
    %v608 = vunpack.c.l.b16 %v446
    %v609 = vunpack.c.h.b16 %v446
    %v610 = vunpack.c.l.b16 %v447
    %v611 = vunpack.c.h.b16 %v447
    %v612 = vunpack.c.l.b16 %v448
    %v613 = vunpack.c.h.b16 %v448
    %v614 = vunpack.c.l.b16 %v449
    %v615 = vunpack.c.h.b16 %v449
    %v616 = vunpack.c.l.b16 %v450
    %v617 = vunpack.c.h.b16 %v450
    %v618 = vunpack.c.l.b16 %v451
    %v619 = vunpack.c.h.b16 %v451
    %v620 = vunpack.c.l.b16 %v452
    %v621 = vunpack.c.h.b16 %v452
    %v622 = vunpack.c.l.b16 %v453
    %v623 = vunpack.c.h.b16 %v453
    %v624 = vunpack.c.l.b16 %v454
    %v625 = vunpack.c.h.b16 %v454
    %v626 = vunpack.c.l.b16 %v455
    %v627 = vunpack.c.h.b16 %v455
    %v628 = vunpack.c.l.b16 %v456
    %v629 = vunpack.c.h.b16 %v456
    %v630 = vunpack.c.l.b16 %v457
    %v631 = vunpack.c.h.b16 %v457
    %v632 = vunpack.c.l.b16 %v458
    %v633 = vunpack.c.h.b16 %v458
    %v634 = vunpack.c.l.b16 %v459
    %v635 = vunpack.c.h.b16 %v459
    %v636 = vunpack.c.l.b16 %v460
    %v637 = vunpack.c.h.b16 %v460
    %v638 = vunpack.c.l.b16 %v461
    %v639 = vunpack.c.h.b16 %v461
    %v640 = vunpack.c.l.b16 %v462
    %v641 = vunpack.c.h.b16 %v462
    %v642 = vunpack.c.l.b16 %v463
    %v643 = vunpack.c.h.b16 %v463
    %v644 = vunpack.c.l.b16 %v464
    %v645 = vunpack.c.h.b16 %v464
    %v646 = vunpack.c.l.b16 %v465
    %v647 = vunpack.c.h.b16 %v465
    %v648 = vunpack.c.l.b16 %v466
    %v649 = vunpack.c.h.b16 %v466
    %v650 = vunpack.c.l.b16 %v467
    %v651 = vunpack.c.h.b16 %v467
    %v652 = vunpack.c.l.b16 %v468
    %v653 = vunpack.c.h.b16 %v468
    %v654 = vunpack.c.l.b16 %v469
    %v655 = vunpack.c.h.b16 %v469
    %v656 = vunpack.c.l.b16 %v470
    %v657 = vunpack.c.h.b16 %v470
    %v658 = vunpack.c.l.b16 %v471
    %v659 = vunpack.c.h.b16 %v471
    %v660 = vunpack.c.l.b16 %v472
    %v661 = vunpack.c.h.b16 %v472
    %v662 = vunpack.c.l.b16 %v473
    %v663 = vunpack.c.h.b16 %v473
    %v664 = vunpack.c.l.b16 %v474
    %v665 = vunpack.c.h.b16 %v474
    %v666 = vunpack.c.l.b16 %v475
    %v667 = vunpack.c.h.b16 %v475
    %v668 = vunpack.c.l.b16 %v476
    %v669 = vunpack.c.h.b16 %v476
    %v670 = vunpack.c.l.b16 %v477
    %v671 = vunpack.c.h.b16 %v477
    %v672 = vunpack.c.l.b16 %v478
    %v673 = vunpack.c.h.b16 %v478
    %v674 = vunpack.c.l.b16 %v479
    %v675 = vunpack.c.h.b16 %v479
    %v676 = vunpack.c.l.b16 %v480
    %v677 = vunpack.c.h.b16 %v480
    %v678 = vunpack.c.l.b16 %v481
    %v679 = vunpack.c.h.b16 %v481
    %v680 = vunpack.c.l.b16 %v482
    %v681 = vunpack.c.h.b16 %v482
    %v682 = vunpack.c.l.b16 %v483
    %v683 = vunpack.c.h.b16 %v483
    %v684 = vunpack.c.l.b16 %v484
    %v685 = vunpack.c.h.b16 %v484
    %v686 = vunpack.c.l.b16 %v485
    %v687 = vunpack.c.h.b16 %v485
    %v688 = vunpack.c.l.b16 %v486
    %v689 = vunpack.c.h.b16 %v486
    %v690 = vunpack.c.l.b16 %v487
    %v691 = vunpack.c.h.b16 %v487
    %v692 = vunpack.c.l.b16 %v488
    %v693 = vunpack.c.h.b16 %v488
    %v694 = vunpack.c.l.b16 %v489
    %v695 = vunpack.c.h.b16 %v489
    %v696 = vunpack.c.l.b16 %v490
    %v697 = vunpack.c.h.b16 %v490
    %v698 = vunpack.c.l.b16 %v491
    %v699 = vunpack.c.h.b16 %v491
    %v700 = vunpack.c.l.b16 %v492
    %v701 = vunpack.c.h.b16 %v492
    %v702 = vunpack.c.l.b16 %v493
    %v703 = vunpack.c.h.b16 %v493
    %v704 = vunpack.c.l.b16 %v494
    %v705 = vunpack.c.h.b16 %v494
    %v706 = vunpack.c.l.b16 %v495
    %v707 = vunpack.c.h.b16 %v495
    %v708 = vpack.c.b16 %v584, %v580
    %v709 = vpack.c.b16 %v585, %v581
    %v710 = vpack.c.b16 %v586, %v582
    %v711 = vpack.c.b16 %v587, %v583
    %v712 = vpack.c.b16 %v592, %v588
    %v713 = vpack.c.b16 %v593, %v589
    %v714 = vpack.c.b16 %v594, %v590
    %v715 = vpack.c.b16 %v595, %v591
    %v716 = vpack.c.b16 %v600, %v596
    %v717 = vpack.c.b16 %v601, %v597
    %v718 = vpack.c.b16 %v602, %v598
    %v719 = vpack.c.b16 %v603, %v599
    %v720 = vpack.c.b16 %v608, %v604
    %v721 = vpack.c.b16 %v609, %v605
    %v722 = vpack.c.b16 %v610, %v606
    %v723 = vpack.c.b16 %v611, %v607
    %v724 = vpack.c.b16 %v616, %v612
    %v725 = vpack.c.b16 %v617, %v613
    %v726 = vpack.c.b16 %v618, %v614
    %v727 = vpack.c.b16 %v619, %v615
    %v728 = vpack.c.b16 %v624, %v620
    %v729 = vpack.c.b16 %v625, %v621
    %v730 = vpack.c.b16 %v626, %v622
    %v731 = vpack.c.b16 %v627, %v623
    %v732 = vpack.c.b16 %v632, %v628
    %v733 = vpack.c.b16 %v633, %v629
    %v734 = vpack.c.b16 %v634, %v630
    %v735 = vpack.c.b16 %v635, %v631
    %v736 = vpack.c.b16 %v640, %v636
    %v737 = vpack.c.b16 %v641, %v637
    %v738 = vpack.c.b16 %v642, %v638
    %v739 = vpack.c.b16 %v643, %v639
    %v740 = vpack.c.b16 %v648, %v644
    %v741 = vpack.c.b16 %v649, %v645
    %v742 = vpack.c.b16 %v650, %v646
    %v743 = vpack.c.b16 %v651, %v647
    %v744 = vpack.c.b16 %v656, %v652
    %v745 = vpack.c.b16 %v657, %v653
    %v746 = vpack.c.b16 %v658, %v654
    %v747 = vpack.c.b16 %v659, %v655
    %v748 = vpack.c.b16 %v664, %v660
    %v749 = vpack.c.b16 %v665, %v661
    %v750 = vpack.c.b16 %v666, %v662
    %v751 = vpack.c.b16 %v667, %v663
    %v752 = vpack.c.b16 %v672, %v668
    %v753 = vpack.c.b16 %v673, %v669
    %v754 = vpack.c.b16 %v674, %v670
    %v755 = vpack.c.b16 %v675, %v671
    %v756 = vpack.c.b16 %v680, %v676
    %v757 = vpack.c.b16 %v681, %v677
    %v758 = vpack.c.b16 %v682, %v678
    %v759 = vpack.c.b16 %v683, %v679
    %v760 = vpack.c.b16 %v688, %v684
    %v761 = vpack.c.b16 %v689, %v685
    %v762 = vpack.c.b16 %v690, %v686
    %v763 = vpack.c.b16 %v691, %v687
    %v764 = vpack.c.b16 %v696, %v692
    %v765 = vpack.c.b16 %v697, %v693
    %v766 = vpack.c.b16 %v698, %v694
    %v767 = vpack.c.b16 %v699, %v695
    %v768 = vpack.c.b16 %v704, %v700
    %v769 = vpack.c.b16 %v705, %v701
    %v770 = vpack.c.b16 %v706, %v702
    %v771 = vpack.c.b16 %v707, %v703
    %836 = vmatpush.bf16.msra.mxu0 %v736
    %837 = vmatpush.bf16.msra.mxu0 %v732
    %838 = vmatpush.bf16.msra.mxu0 %v728
    %839 = vmatpush.bf16.msra.mxu0 %v724
    %840 = vmatpush.bf16.msra.mxu0 %v720
    %841 = vmatpush.bf16.msra.mxu0 %v716
    %842 = vmatpush.bf16.msra.mxu0 %v712
    %843 = vmatpush.bf16.msra.mxu0 %v708
    %844 = vmatmul.bf16.gmra.mxu0 %v512
    %v845 = vpop.f32.mrf.mxu0
    %v846 = vadd.f32 %v498, %v845
    %v847 = vpop.f32.mrf.mxu0
    %v848 = vadd.f32 %v498, %v847
    %849 = vdwg.mxu0
    %850 = vmatpush.bf16.msra.mxu0 %v768
    %851 = vmatpush.bf16.msra.mxu0 %v764
    %852 = vmatpush.bf16.msra.mxu0 %v760
    %853 = vmatpush.bf16.msra.mxu0 %v756
    %854 = vmatpush.bf16.msra.mxu0 %v752
    %855 = vmatpush.bf16.msra.mxu0 %v748
    %856 = vmatpush.bf16.msra.mxu0 %v744
    %857 = vmatpush.bf16.msra.mxu0 %v740
    %858 = vmatmul.bf16.gmra.mxu0 %v513
    %v859 = vpop.f32.mrf.mxu0
    %v860 = vadd.f32 %v846, %v859
    %v861 = vpop.f32.mrf.mxu0
    %v862 = vadd.f32 %v848, %v861
    %863 = vdwg.mxu0
    %864 = vmatpush.bf16.msra.mxu0 %v737
    %865 = vmatpush.bf16.msra.mxu0 %v733
    %866 = vmatpush.bf16.msra.mxu0 %v729
    %867 = vmatpush.bf16.msra.mxu0 %v725
    %868 = vmatpush.bf16.msra.mxu0 %v721
    %869 = vmatpush.bf16.msra.mxu0 %v717
    %870 = vmatpush.bf16.msra.mxu0 %v713
    %871 = vmatpush.bf16.msra.mxu0 %v709
    %872 = vmatmul.bf16.gmra.mxu0 %v512
    %v873 = vpop.f32.mrf.mxu0
    %v874 = vadd.f32 %v499, %v873
    %v875 = vpop.f32.mrf.mxu0
    %v876 = vadd.f32 %v499, %v875
    %877 = vdwg.mxu0
    %878 = vmatpush.bf16.msra.mxu0 %v769
    %879 = vmatpush.bf16.msra.mxu0 %v765
    %880 = vmatpush.bf16.msra.mxu0 %v761
    %881 = vmatpush.bf16.msra.mxu0 %v757
    %882 = vmatpush.bf16.msra.mxu0 %v753
    %883 = vmatpush.bf16.msra.mxu0 %v749
    %884 = vmatpush.bf16.msra.mxu0 %v745
    %885 = vmatpush.bf16.msra.mxu0 %v741
    %886 = vmatmul.bf16.gmra.mxu0 %v513
    %v887 = vpop.f32.mrf.mxu0
    %v888 = vadd.f32 %v874, %v887
    %v889 = vpop.f32.mrf.mxu0
    %v890 = vadd.f32 %v876, %v889
    %891 = vdwg.mxu0
    %892 = vmatpush.bf16.msra.mxu0 %v738
    %893 = vmatpush.bf16.msra.mxu0 %v734
    %894 = vmatpush.bf16.msra.mxu0 %v730
    %895 = vmatpush.bf16.msra.mxu0 %v726
    %896 = vmatpush.bf16.msra.mxu0 %v722
    %897 = vmatpush.bf16.msra.mxu0 %v718
    %898 = vmatpush.bf16.msra.mxu0 %v714
    %899 = vmatpush.bf16.msra.mxu0 %v710
    %900 = vmatmul.bf16.gmra.mxu0 %v512
    %v901 = vpop.f32.mrf.mxu0
    %v902 = vadd.f32 %v500, %v901
    %v903 = vpop.f32.mrf.mxu0
    %v904 = vadd.f32 %v500, %v903
    %905 = vdwg.mxu0
    %906 = vmatpush.bf16.msra.mxu0 %v770
    %907 = vmatpush.bf16.msra.mxu0 %v766
    %908 = vmatpush.bf16.msra.mxu0 %v762
    %909 = vmatpush.bf16.msra.mxu0 %v758
    %910 = vmatpush.bf16.msra.mxu0 %v754
    %911 = vmatpush.bf16.msra.mxu0 %v750
    %912 = vmatpush.bf16.msra.mxu0 %v746
    %913 = vmatpush.bf16.msra.mxu0 %v742
    %914 = vmatmul.bf16.gmra.mxu0 %v513
    %v915 = vpop.f32.mrf.mxu0
    %v916 = vadd.f32 %v902, %v915
    %v917 = vpop.f32.mrf.mxu0
    %v918 = vadd.f32 %v904, %v917
    %919 = vdwg.mxu0
    %920 = vmatpush.bf16.msra.mxu0 %v739
    %921 = vmatpush.bf16.msra.mxu0 %v735
    %922 = vmatpush.bf16.msra.mxu0 %v731
    %923 = vmatpush.bf16.msra.mxu0 %v727
    %924 = vmatpush.bf16.msra.mxu0 %v723
    %925 = vmatpush.bf16.msra.mxu0 %v719
    %926 = vmatpush.bf16.msra.mxu0 %v715
    %927 = vmatpush.bf16.msra.mxu0 %v711
    %928 = vmatmul.bf16.gmra.mxu0 %v512
    %v929 = vpop.f32.mrf.mxu0
    %v930 = vadd.f32 %v501, %v929
    %v931 = vpop.f32.mrf.mxu0
    %v932 = vadd.f32 %v501, %v931
    %933 = vdwg.mxu0
    %934 = vmatpush.bf16.msra.mxu0 %v771
    %935 = vmatpush.bf16.msra.mxu0 %v767
    %936 = vmatpush.bf16.msra.mxu0 %v763
    %937 = vmatpush.bf16.msra.mxu0 %v759
    %938 = vmatpush.bf16.msra.mxu0 %v755
    %939 = vmatpush.bf16.msra.mxu0 %v751
    %940 = vmatpush.bf16.msra.mxu0 %v747
    %941 = vmatpush.bf16.msra.mxu0 %v743
    %942 = vmatmul.bf16.gmra.mxu0 %v513
    %v943 = vpop.f32.mrf.mxu0
    %v944 = vadd.f32 %v930, %v943
    %v945 = vpop.f32.mrf.mxu0
    %v946 = vadd.f32 %v932, %v945
    %947 = vdwg.mxu0
    %v948 = vld [vmem:[#allocation11] sm:$0xff]
    %v949 = vld [vmem:[#allocation11 + $0x8] sm:$0xff]
    %v950 = vmul.f32 %v860, 0.5
    %v951 = vmul.f32 %v862, 0.5
    %v952 = vtanh.pop %v950
    %v953 = vtanh.pop %v951
    %v954 = vmul.f32 %v952, 0.5
    %v955 = vmul.f32 %v953, 0.5
    %v956 = vadd.f32 %v954, 0.5
    %v957 = vadd.f32 %v955, 0.5
    %v958 = vmul.f32 %v888, 0.5
    %v959 = vmul.f32 %v890, 0.5
    %v960 = vtanh.pop %v958
    %v961 = vtanh.pop %v959
    %v962 = vmul.f32 %v960, 0.5
    %v963 = vmul.f32 %v961, 0.5
    %v964 = vadd.f32 %v962, 0.5
    %v965 = vadd.f32 %v963, 0.5
    %v966 = vtanh.pop %v916
    %v967 = vtanh.pop %v918
    %v968 = vmul.f32 %v944, 0.5
    %v969 = vmul.f32 %v946, 0.5
    %v970 = vtanh.pop %v968
    %v971 = vtanh.pop %v969
    %v972 = vmul.f32 %v970, 0.5
    %v973 = vmul.f32 %v971, 0.5
    %v974 = vadd.f32 %v972, 0.5
    %v975 = vadd.f32 %v973, 0.5
    %v976 = vmul.f32 %v964, %v948
    %v977 = vmul.f32 %v965, %v949
    %v978 = vmul.f32 %v956, %v966
    %v979 = vmul.f32 %v957, %v967
    %v980 = vadd.f32 %v976, %v978
    %v981 = vadd.f32 %v977, %v979
    %v982 = vtanh.pop %v980
    %v983 = vtanh.pop %v981
    %v984 = vmul.f32 %v974, %v982
    %v985 = vmul.f32 %v975, %v983
    %v986 = vpack.c.bf16 %v984, %v984
    %v987 = vpack.c.bf16 %v985, %v985
    %988 = vst [vmem:[#allocation3] sm:$0xf] %v986
    %989 = vst [vmem:[#allocation3 + $0x8] sm:$0xf] %v987
    %s990 = scalar_lea.vmem [#allocation9], 16
    %v991 = vld [vmem:[%s990] sm:$0xff]
    %v992 = vld [vmem:[%s990 + $0x8] sm:$0xff]
    %v993 = vpack.c.bf16 %v991, %v991
    %v994 = vpack.c.bf16 %v992, %v992
    %995 = vst [vmem:[#allocation3 + $0x4] sm:$0xf] %v993
    %996 = vst [vmem:[#allocation3 + $0xc] sm:$0xf] %v994
    %v997 = vld [vmem:[#allocation3] sm:$0xff]
    %v998 = vld [vmem:[#allocation3 + $0x8] sm:$0xff]
    %v999 = vld [vmem:[#allocation15] sm:$0xff]
    %v1000 = vld [vmem:[#allocation15 + $0x8] sm:$0xff]
    %v1001 = vld [vmem:[#allocation15 + $0x10] sm:$0xff]
    %v1002 = vld [vmem:[#allocation15 + $0x18] sm:$0xff]
    %v1003 = vld [vmem:[#allocation15 + $0x20] sm:$0xff]
    %v1004 = vld [vmem:[#allocation15 + $0x28] sm:$0xff]
    %v1005 = vld [vmem:[#allocation15 + $0x30] sm:$0xff]
    %v1006 = vld [vmem:[#allocation15 + $0x38] sm:$0xff]
    %v1007 = vld [vmem:[#allocation15 + $0x40] sm:$0xff]
    %v1008 = vld [vmem:[#allocation15 + $0x48] sm:$0xff]
    %v1009 = vld [vmem:[#allocation15 + $0x50] sm:$0xff]
    %v1010 = vld [vmem:[#allocation15 + $0x58] sm:$0xff]
    %v1011 = vld [vmem:[#allocation15 + $0x60] sm:$0xff]
    %v1012 = vld [vmem:[#allocation15 + $0x68] sm:$0xff]
    %v1013 = vld [vmem:[#allocation15 + $0x70] sm:$0xff]
    %v1014 = vld [vmem:[#allocation15 + $0x78] sm:$0xff]
    %v1015 = vld [vmem:[#allocation15 + $0x80] sm:$0xff]
    %v1016 = vld [vmem:[#allocation15 + $0x88] sm:$0xff]
    %v1017 = vld [vmem:[#allocation15 + $0x90] sm:$0xff]
    %v1018 = vld [vmem:[#allocation15 + $0x98] sm:$0xff]
    %v1019 = vld [vmem:[#allocation15 + $0xa0] sm:$0xff]
    %v1020 = vld [vmem:[#allocation15 + $0xa8] sm:$0xff]
    %v1021 = vld [vmem:[#allocation15 + $0xb0] sm:$0xff]
    %v1022 = vld [vmem:[#allocation15 + $0xb8] sm:$0xff]
    %v1023 = vld [vmem:[#allocation15 + $0xc0] sm:$0xff]
    %v1024 = vld [vmem:[#allocation15 + $0xc8] sm:$0xff]
    %v1025 = vld [vmem:[#allocation15 + $0xd0] sm:$0xff]
    %v1026 = vld [vmem:[#allocation15 + $0xd8] sm:$0xff]
    %v1027 = vld [vmem:[#allocation15 + $0xe0] sm:$0xff]
    %v1028 = vld [vmem:[#allocation15 + $0xe8] sm:$0xff]
    %v1029 = vld [vmem:[#allocation15 + $0xf0] sm:$0xff]
    %v1030 = vld [vmem:[#allocation15 + $0xf8] sm:$0xff]
    %v1031 = vld [vmem:[#allocation15 + $0x100] sm:$0xff]
    %v1032 = vld [vmem:[#allocation15 + $0x108] sm:$0xff]
    %v1033 = vld [vmem:[#allocation15 + $0x110] sm:$0xff]
    %v1034 = vld [vmem:[#allocation15 + $0x118] sm:$0xff]
    %v1035 = vld [vmem:[#allocation15 + $0x120] sm:$0xff]
    %v1036 = vld [vmem:[#allocation15 + $0x128] sm:$0xff]
    %v1037 = vld [vmem:[#allocation15 + $0x130] sm:$0xff]
    %v1038 = vld [vmem:[#allocation15 + $0x138] sm:$0xff]
    %v1039 = vld [vmem:[#allocation15 + $0x140] sm:$0xff]
    %v1040 = vld [vmem:[#allocation15 + $0x148] sm:$0xff]
    %v1041 = vld [vmem:[#allocation15 + $0x150] sm:$0xff]
    %v1042 = vld [vmem:[#allocation15 + $0x158] sm:$0xff]
    %v1043 = vld [vmem:[#allocation15 + $0x160] sm:$0xff]
    %v1044 = vld [vmem:[#allocation15 + $0x168] sm:$0xff]
    %v1045 = vld [vmem:[#allocation15 + $0x170] sm:$0xff]
    %v1046 = vld [vmem:[#allocation15 + $0x178] sm:$0xff]
    %v1047 = vld [vmem:[#allocation15 + $0x180] sm:$0xff]
    %v1048 = vld [vmem:[#allocation15 + $0x188] sm:$0xff]
    %v1049 = vld [vmem:[#allocation15 + $0x190] sm:$0xff]
    %v1050 = vld [vmem:[#allocation15 + $0x198] sm:$0xff]
    %v1051 = vld [vmem:[#allocation15 + $0x1a0] sm:$0xff]
    %v1052 = vld [vmem:[#allocation15 + $0x1a8] sm:$0xff]
    %v1053 = vld [vmem:[#allocation15 + $0x1b0] sm:$0xff]
    %v1054 = vld [vmem:[#allocation15 + $0x1b8] sm:$0xff]
    %v1055 = vld [vmem:[#allocation15 + $0x1c0] sm:$0xff]
    %v1056 = vld [vmem:[#allocation15 + $0x1c8] sm:$0xff]
    %v1057 = vld [vmem:[#allocation15 + $0x1d0] sm:$0xff]
    %v1058 = vld [vmem:[#allocation15 + $0x1d8] sm:$0xff]
    %v1059 = vld [vmem:[#allocation15 + $0x1e0] sm:$0xff]
    %v1060 = vld [vmem:[#allocation15 + $0x1e8] sm:$0xff]
    %v1061 = vld [vmem:[#allocation15 + $0x1f0] sm:$0xff]
    %v1062 = vld [vmem:[#allocation15 + $0x1f8] sm:$0xff]
    %v1063 = vld [vmem:[#allocation17] sm:$0xf]
    %v1065 = vperm.slane %v1063, 0
    %v1066 = vperm.slane %v1063, 1
    %v1067 = vperm.slane %v1063, 2
    %v1068 = vperm.slane %v1063, 3
    %v1075 = vunpack.c.l.b16 %v997
    %v1076 = vunpack.c.h.b16 %v997
    %v1077 = vunpack.c.l.b16 %v998
    %v1078 = vunpack.c.h.b16 %v998
    %v1079 = vpack.c.b16 %v1077, %v1075
    %v1080 = vpack.c.b16 %v1078, %v1076
    %v1147 = vunpack.c.l.b16 %v999
    %v1148 = vunpack.c.h.b16 %v999
    %v1149 = vunpack.c.l.b16 %v1000
    %v1150 = vunpack.c.h.b16 %v1000
    %v1151 = vunpack.c.l.b16 %v1001
    %v1152 = vunpack.c.h.b16 %v1001
    %v1153 = vunpack.c.l.b16 %v1002
    %v1154 = vunpack.c.h.b16 %v1002
    %v1155 = vunpack.c.l.b16 %v1003
    %v1156 = vunpack.c.h.b16 %v1003
    %v1157 = vunpack.c.l.b16 %v1004
    %v1158 = vunpack.c.h.b16 %v1004
    %v1159 = vunpack.c.l.b16 %v1005
    %v1160 = vunpack.c.h.b16 %v1005
    %v1161 = vunpack.c.l.b16 %v1006
    %v1162 = vunpack.c.h.b16 %v1006
    %v1163 = vunpack.c.l.b16 %v1007
    %v1164 = vunpack.c.h.b16 %v1007
    %v1165 = vunpack.c.l.b16 %v1008
    %v1166 = vunpack.c.h.b16 %v1008
    %v1167 = vunpack.c.l.b16 %v1009
    %v1168 = vunpack.c.h.b16 %v1009
    %v1169 = vunpack.c.l.b16 %v1010
    %v1170 = vunpack.c.h.b16 %v1010
    %v1171 = vunpack.c.l.b16 %v1011
    %v1172 = vunpack.c.h.b16 %v1011
    %v1173 = vunpack.c.l.b16 %v1012
    %v1174 = vunpack.c.h.b16 %v1012
    %v1175 = vunpack.c.l.b16 %v1013
    %v1176 = vunpack.c.h.b16 %v1013
    %v1177 = vunpack.c.l.b16 %v1014
    %v1178 = vunpack.c.h.b16 %v1014
    %v1179 = vunpack.c.l.b16 %v1015
    %v1180 = vunpack.c.h.b16 %v1015
    %v1181 = vunpack.c.l.b16 %v1016
    %v1182 = vunpack.c.h.b16 %v1016
    %v1183 = vunpack.c.l.b16 %v1017
    %v1184 = vunpack.c.h.b16 %v1017
    %v1185 = vunpack.c.l.b16 %v1018
    %v1186 = vunpack.c.h.b16 %v1018
    %v1187 = vunpack.c.l.b16 %v1019
    %v1188 = vunpack.c.h.b16 %v1019
    %v1189 = vunpack.c.l.b16 %v1020
    %v1190 = vunpack.c.h.b16 %v1020
    %v1191 = vunpack.c.l.b16 %v1021
    %v1192 = vunpack.c.h.b16 %v1021
    %v1193 = vunpack.c.l.b16 %v1022
    %v1194 = vunpack.c.h.b16 %v1022
    %v1195 = vunpack.c.l.b16 %v1023
    %v1196 = vunpack.c.h.b16 %v1023
    %v1197 = vunpack.c.l.b16 %v1024
    %v1198 = vunpack.c.h.b16 %v1024
    %v1199 = vunpack.c.l.b16 %v1025
    %v1200 = vunpack.c.h.b16 %v1025
    %v1201 = vunpack.c.l.b16 %v1026
    %v1202 = vunpack.c.h.b16 %v1026
    %v1203 = vunpack.c.l.b16 %v1027
    %v1204 = vunpack.c.h.b16 %v1027
    %v1205 = vunpack.c.l.b16 %v1028
    %v1206 = vunpack.c.h.b16 %v1028
    %v1207 = vunpack.c.l.b16 %v1029
    %v1208 = vunpack.c.h.b16 %v1029
    %v1209 = vunpack.c.l.b16 %v1030
    %v1210 = vunpack.c.h.b16 %v1030
    %v1211 = vunpack.c.l.b16 %v1031
    %v1212 = vunpack.c.h.b16 %v1031
    %v1213 = vunpack.c.l.b16 %v1032
    %v1214 = vunpack.c.h.b16 %v1032
    %v1215 = vunpack.c.l.b16 %v1033
    %v1216 = vunpack.c.h.b16 %v1033
    %v1217 = vunpack.c.l.b16 %v1034
    %v1218 = vunpack.c.h.b16 %v1034
    %v1219 = vunpack.c.l.b16 %v1035
    %v1220 = vunpack.c.h.b16 %v1035
    %v1221 = vunpack.c.l.b16 %v1036
    %v1222 = vunpack.c.h.b16 %v1036
    %v1223 = vunpack.c.l.b16 %v1037
    %v1224 = vunpack.c.h.b16 %v1037
    %v1225 = vunpack.c.l.b16 %v1038
    %v1226 = vunpack.c.h.b16 %v1038
    %v1227 = vunpack.c.l.b16 %v1039
    %v1228 = vunpack.c.h.b16 %v1039
    %v1229 = vunpack.c.l.b16 %v1040
    %v1230 = vunpack.c.h.b16 %v1040
    %v1231 = vunpack.c.l.b16 %v1041
    %v1232 = vunpack.c.h.b16 %v1041
    %v1233 = vunpack.c.l.b16 %v1042
    %v1234 = vunpack.c.h.b16 %v1042
    %v1235 = vunpack.c.l.b16 %v1043
    %v1236 = vunpack.c.h.b16 %v1043
    %v1237 = vunpack.c.l.b16 %v1044
    %v1238 = vunpack.c.h.b16 %v1044
    %v1239 = vunpack.c.l.b16 %v1045
    %v1240 = vunpack.c.h.b16 %v1045
    %v1241 = vunpack.c.l.b16 %v1046
    %v1242 = vunpack.c.h.b16 %v1046
    %v1243 = vunpack.c.l.b16 %v1047
    %v1244 = vunpack.c.h.b16 %v1047
    %v1245 = vunpack.c.l.b16 %v1048
    %v1246 = vunpack.c.h.b16 %v1048
    %v1247 = vunpack.c.l.b16 %v1049
    %v1248 = vunpack.c.h.b16 %v1049
    %v1249 = vunpack.c.l.b16 %v1050
    %v1250 = vunpack.c.h.b16 %v1050
    %v1251 = vunpack.c.l.b16 %v1051
    %v1252 = vunpack.c.h.b16 %v1051
    %v1253 = vunpack.c.l.b16 %v1052
    %v1254 = vunpack.c.h.b16 %v1052
    %v1255 = vunpack.c.l.b16 %v1053
    %v1256 = vunpack.c.h.b16 %v1053
    %v1257 = vunpack.c.l.b16 %v1054
    %v1258 = vunpack.c.h.b16 %v1054
    %v1259 = vunpack.c.l.b16 %v1055
    %v1260 = vunpack.c.h.b16 %v1055
    %v1261 = vunpack.c.l.b16 %v1056
    %v1262 = vunpack.c.h.b16 %v1056
    %v1263 = vunpack.c.l.b16 %v1057
    %v1264 = vunpack.c.h.b16 %v1057
    %v1265 = vunpack.c.l.b16 %v1058
    %v1266 = vunpack.c.h.b16 %v1058
    %v1267 = vunpack.c.l.b16 %v1059
    %v1268 = vunpack.c.h.b16 %v1059
    %v1269 = vunpack.c.l.b16 %v1060
    %v1270 = vunpack.c.h.b16 %v1060
    %v1271 = vunpack.c.l.b16 %v1061
    %v1272 = vunpack.c.h.b16 %v1061
    %v1273 = vunpack.c.l.b16 %v1062
    %v1274 = vunpack.c.h.b16 %v1062
    %v1275 = vpack.c.b16 %v1151, %v1147
    %v1276 = vpack.c.b16 %v1152, %v1148
    %v1277 = vpack.c.b16 %v1153, %v1149
    %v1278 = vpack.c.b16 %v1154, %v1150
    %v1279 = vpack.c.b16 %v1159, %v1155
    %v1280 = vpack.c.b16 %v1160, %v1156
    %v1281 = vpack.c.b16 %v1161, %v1157
    %v1282 = vpack.c.b16 %v1162, %v1158
    %v1283 = vpack.c.b16 %v1167, %v1163
    %v1284 = vpack.c.b16 %v1168, %v1164
    %v1285 = vpack.c.b16 %v1169, %v1165
    %v1286 = vpack.c.b16 %v1170, %v1166
    %v1287 = vpack.c.b16 %v1175, %v1171
    %v1288 = vpack.c.b16 %v1176, %v1172
    %v1289 = vpack.c.b16 %v1177, %v1173
    %v1290 = vpack.c.b16 %v1178, %v1174
    %v1291 = vpack.c.b16 %v1183, %v1179
    %v1292 = vpack.c.b16 %v1184, %v1180
    %v1293 = vpack.c.b16 %v1185, %v1181
    %v1294 = vpack.c.b16 %v1186, %v1182
    %v1295 = vpack.c.b16 %v1191, %v1187
    %v1296 = vpack.c.b16 %v1192, %v1188
    %v1297 = vpack.c.b16 %v1193, %v1189
    %v1298 = vpack.c.b16 %v1194, %v1190
    %v1299 = vpack.c.b16 %v1199, %v1195
    %v1300 = vpack.c.b16 %v1200, %v1196
    %v1301 = vpack.c.b16 %v1201, %v1197
    %v1302 = vpack.c.b16 %v1202, %v1198
    %v1303 = vpack.c.b16 %v1207, %v1203
    %v1304 = vpack.c.b16 %v1208, %v1204
    %v1305 = vpack.c.b16 %v1209, %v1205
    %v1306 = vpack.c.b16 %v1210, %v1206
    %v1307 = vpack.c.b16 %v1215, %v1211
    %v1308 = vpack.c.b16 %v1216, %v1212
    %v1309 = vpack.c.b16 %v1217, %v1213
    %v1310 = vpack.c.b16 %v1218, %v1214
    %v1311 = vpack.c.b16 %v1223, %v1219
    %v1312 = vpack.c.b16 %v1224, %v1220
    %v1313 = vpack.c.b16 %v1225, %v1221
    %v1314 = vpack.c.b16 %v1226, %v1222
    %v1315 = vpack.c.b16 %v1231, %v1227
    %v1316 = vpack.c.b16 %v1232, %v1228
    %v1317 = vpack.c.b16 %v1233, %v1229
    %v1318 = vpack.c.b16 %v1234, %v1230
    %v1319 = vpack.c.b16 %v1239, %v1235
    %v1320 = vpack.c.b16 %v1240, %v1236
    %v1321 = vpack.c.b16 %v1241, %v1237
    %v1322 = vpack.c.b16 %v1242, %v1238
    %v1323 = vpack.c.b16 %v1247, %v1243
    %v1324 = vpack.c.b16 %v1248, %v1244
    %v1325 = vpack.c.b16 %v1249, %v1245
    %v1326 = vpack.c.b16 %v1250, %v1246
    %v1327 = vpack.c.b16 %v1255, %v1251
    %v1328 = vpack.c.b16 %v1256, %v1252
    %v1329 = vpack.c.b16 %v1257, %v1253
    %v1330 = vpack.c.b16 %v1258, %v1254
    %v1331 = vpack.c.b16 %v1263, %v1259
    %v1332 = vpack.c.b16 %v1264, %v1260
    %v1333 = vpack.c.b16 %v1265, %v1261
    %v1334 = vpack.c.b16 %v1266, %v1262
    %v1335 = vpack.c.b16 %v1271, %v1267
    %v1336 = vpack.c.b16 %v1272, %v1268
    %v1337 = vpack.c.b16 %v1273, %v1269
    %v1338 = vpack.c.b16 %v1274, %v1270
    %1403 = vmatpush.bf16.msra.mxu0 %v1303
    %1404 = vmatpush.bf16.msra.mxu0 %v1299
    %1405 = vmatpush.bf16.msra.mxu0 %v1295
    %1406 = vmatpush.bf16.msra.mxu0 %v1291
    %1407 = vmatpush.bf16.msra.mxu0 %v1287
    %1408 = vmatpush.bf16.msra.mxu0 %v1283
    %1409 = vmatpush.bf16.msra.mxu0 %v1279
    %1410 = vmatpush.bf16.msra.mxu0 %v1275
    %1411 = vmatmul.bf16.gmra.mxu0 %v1079
    %v1412 = vpop.f32.mrf.mxu0
    %v1413 = vadd.f32 %v1065, %v1412
    %v1414 = vpop.f32.mrf.mxu0
    %v1415 = vadd.f32 %v1065, %v1414
    %1416 = vdwg.mxu0
    %1417 = vmatpush.bf16.msra.mxu0 %v1335
    %1418 = vmatpush.bf16.msra.mxu0 %v1331
    %1419 = vmatpush.bf16.msra.mxu0 %v1327
    %1420 = vmatpush.bf16.msra.mxu0 %v1323
    %1421 = vmatpush.bf16.msra.mxu0 %v1319
    %1422 = vmatpush.bf16.msra.mxu0 %v1315
    %1423 = vmatpush.bf16.msra.mxu0 %v1311
    %1424 = vmatpush.bf16.msra.mxu0 %v1307
    %1425 = vmatmul.bf16.gmra.mxu0 %v1080
    %v1426 = vpop.f32.mrf.mxu0
    %v1427 = vadd.f32 %v1413, %v1426
    %v1428 = vpop.f32.mrf.mxu0
    %v1429 = vadd.f32 %v1415, %v1428
    %1430 = vdwg.mxu0
    %1431 = vmatpush.bf16.msra.mxu0 %v1304
    %1432 = vmatpush.bf16.msra.mxu0 %v1300
    %1433 = vmatpush.bf16.msra.mxu0 %v1296
    %1434 = vmatpush.bf16.msra.mxu0 %v1292
    %1435 = vmatpush.bf16.msra.mxu0 %v1288
    %1436 = vmatpush.bf16.msra.mxu0 %v1284
    %1437 = vmatpush.bf16.msra.mxu0 %v1280
    %1438 = vmatpush.bf16.msra.mxu0 %v1276
    %1439 = vmatmul.bf16.gmra.mxu0 %v1079
    %v1440 = vpop.f32.mrf.mxu0
    %v1441 = vadd.f32 %v1066, %v1440
    %v1442 = vpop.f32.mrf.mxu0
    %v1443 = vadd.f32 %v1066, %v1442
    %1444 = vdwg.mxu0
    %1445 = vmatpush.bf16.msra.mxu0 %v1336
    %1446 = vmatpush.bf16.msra.mxu0 %v1332
    %1447 = vmatpush.bf16.msra.mxu0 %v1328
    %1448 = vmatpush.bf16.msra.mxu0 %v1324
    %1449 = vmatpush.bf16.msra.mxu0 %v1320
    %1450 = vmatpush.bf16.msra.mxu0 %v1316
    %1451 = vmatpush.bf16.msra.mxu0 %v1312
    %1452 = vmatpush.bf16.msra.mxu0 %v1308
    %1453 = vmatmul.bf16.gmra.mxu0 %v1080
    %v1454 = vpop.f32.mrf.mxu0
    %v1455 = vadd.f32 %v1441, %v1454
    %v1456 = vpop.f32.mrf.mxu0
    %v1457 = vadd.f32 %v1443, %v1456
    %1458 = vdwg.mxu0
    %1459 = vmatpush.bf16.msra.mxu0 %v1305
    %1460 = vmatpush.bf16.msra.mxu0 %v1301
    %1461 = vmatpush.bf16.msra.mxu0 %v1297
    %1462 = vmatpush.bf16.msra.mxu0 %v1293
    %1463 = vmatpush.bf16.msra.mxu0 %v1289
    %1464 = vmatpush.bf16.msra.mxu0 %v1285
    %1465 = vmatpush.bf16.msra.mxu0 %v1281
    %1466 = vmatpush.bf16.msra.mxu0 %v1277
    %1467 = vmatmul.bf16.gmra.mxu0 %v1079
    %v1468 = vpop.f32.mrf.mxu0
    %v1469 = vadd.f32 %v1067, %v1468
    %v1470 = vpop.f32.mrf.mxu0
    %v1471 = vadd.f32 %v1067, %v1470
    %1472 = vdwg.mxu0
    %1473 = vmatpush.bf16.msra.mxu0 %v1337
    %1474 = vmatpush.bf16.msra.mxu0 %v1333
    %1475 = vmatpush.bf16.msra.mxu0 %v1329
    %1476 = vmatpush.bf16.msra.mxu0 %v1325
    %1477 = vmatpush.bf16.msra.mxu0 %v1321
    %1478 = vmatpush.bf16.msra.mxu0 %v1317
    %1479 = vmatpush.bf16.msra.mxu0 %v1313
    %1480 = vmatpush.bf16.msra.mxu0 %v1309
    %1481 = vmatmul.bf16.gmra.mxu0 %v1080
    %v1482 = vpop.f32.mrf.mxu0
    %v1483 = vadd.f32 %v1469, %v1482
    %v1484 = vpop.f32.mrf.mxu0
    %v1485 = vadd.f32 %v1471, %v1484
    %1486 = vdwg.mxu0
    %1487 = vmatpush.bf16.msra.mxu0 %v1306
    %1488 = vmatpush.bf16.msra.mxu0 %v1302
    %1489 = vmatpush.bf16.msra.mxu0 %v1298
    %1490 = vmatpush.bf16.msra.mxu0 %v1294
    %1491 = vmatpush.bf16.msra.mxu0 %v1290
    %1492 = vmatpush.bf16.msra.mxu0 %v1286
    %1493 = vmatpush.bf16.msra.mxu0 %v1282
    %1494 = vmatpush.bf16.msra.mxu0 %v1278
    %1495 = vmatmul.bf16.gmra.mxu0 %v1079
    %v1496 = vpop.f32.mrf.mxu0
    %v1497 = vadd.f32 %v1068, %v1496
    %v1498 = vpop.f32.mrf.mxu0
    %v1499 = vadd.f32 %v1068, %v1498
    %1500 = vdwg.mxu0
    %1501 = vmatpush.bf16.msra.mxu0 %v1338
    %1502 = vmatpush.bf16.msra.mxu0 %v1334
    %1503 = vmatpush.bf16.msra.mxu0 %v1330
    %1504 = vmatpush.bf16.msra.mxu0 %v1326
    %1505 = vmatpush.bf16.msra.mxu0 %v1322
    %1506 = vmatpush.bf16.msra.mxu0 %v1318
    %1507 = vmatpush.bf16.msra.mxu0 %v1314
    %1508 = vmatpush.bf16.msra.mxu0 %v1310
    %1509 = vmatmul.bf16.gmra.mxu0 %v1080
    %v1510 = vpop.f32.mrf.mxu0
    %v1511 = vadd.f32 %v1497, %v1510
    %v1512 = vpop.f32.mrf.mxu0
    %v1513 = vadd.f32 %v1499, %v1512
    %1514 = vdwg.mxu0
    %s1515 = scalar_lea.vmem [#allocation11], 16
    %v1516 = vld [vmem:[%s1515] sm:$0xff]
    %v1517 = vld [vmem:[%s1515 + $0x8] sm:$0xff]
    %v1518 = vmul.f32 %v1427, 0.5
    %v1519 = vmul.f32 %v1429, 0.5
    %v1520 = vtanh.pop %v1518
    %v1521 = vtanh.pop %v1519
    %v1522 = vmul.f32 %v1520, 0.5
    %v1523 = vmul.f32 %v1521, 0.5
    %v1524 = vadd.f32 %v1522, 0.5
    %v1525 = vadd.f32 %v1523, 0.5
    %v1526 = vmul.f32 %v1455, 0.5
    %v1527 = vmul.f32 %v1457, 0.5
    %v1528 = vtanh.pop %v1526
    %v1529 = vtanh.pop %v1527
    %v1530 = vmul.f32 %v1528, 0.5
    %v1531 = vmul.f32 %v1529, 0.5
    %v1532 = vadd.f32 %v1530, 0.5
    %v1533 = vadd.f32 %v1531, 0.5
    %v1534 = vtanh.pop %v1483
    %v1535 = vtanh.pop %v1485
    %v1536 = vmul.f32 %v1511, 0.5
    %v1537 = vmul.f32 %v1513, 0.5
    %v1538 = vtanh.pop %v1536
    %v1539 = vtanh.pop %v1537
    %v1540 = vmul.f32 %v1538, 0.5
    %v1541 = vmul.f32 %v1539, 0.5
    %v1542 = vadd.f32 %v1540, 0.5
    %v1543 = vadd.f32 %v1541, 0.5
    %v1544 = vmul.f32 %v1532, %v1516
    %v1545 = vmul.f32 %v1533, %v1517
    %v1546 = vmul.f32 %v1524, %v1534
    %v1547 = vmul.f32 %v1525, %v1535
    %v1548 = vadd.f32 %v1544, %v1546
    %v1549 = vadd.f32 %v1545, %v1547
    %v1550 = vtanh.pop %v1548
    %v1551 = vtanh.pop %v1549
    %v1552 = vmul.f32 %v1542, %v1550
    %v1553 = vmul.f32 %v1543, %v1551
    %v1554 = vpack.c.bf16 %v1553, %v1552
    %v1555 = vld [vmem:[%s8] sm:$0xff]
    %v1556 = vld [vmem:[%s8 + $0x8] sm:$0xff]
    %v1557 = vld [vmem:[%s8 + $0x10] sm:$0xff]
    %v1558 = vld [vmem:[%s8 + $0x18] sm:$0xff]
    %v1559 = vld [vmem:[%s8 + $0x20] sm:$0xff]
    %v1560 = vld [vmem:[%s8 + $0x28] sm:$0xff]
    %v1561 = vld [vmem:[%s8 + $0x30] sm:$0xff]
    %v1562 = vld [vmem:[%s8 + $0x38] sm:$0xff]
    %v1563 = vld [vmem:[%s8 + $0x40] sm:$0xff]
    %v1564 = vld [vmem:[%s8 + $0x48] sm:$0xff]
    %v1565 = vld [vmem:[%s8 + $0x50] sm:$0xff]
    %v1566 = vld [vmem:[%s8 + $0x58] sm:$0xff]
    %v1567 = vld [vmem:[%s8 + $0x60] sm:$0xff]
    %v1568 = vld [vmem:[%s8 + $0x68] sm:$0xff]
    %v1569 = vld [vmem:[%s8 + $0x70] sm:$0xff]
    %v1570 = vld [vmem:[%s8 + $0x78] sm:$0xff]
    %v1571 = vld [vmem:[#allocation18] sm:$0x3]
    %v1573 = vperm.slane %v1571, 0
    %v1574 = vperm.slane %v1571, 1
    %v1593 = vunpack.c.l.b16 %v1555
    %v1594 = vunpack.c.h.b16 %v1555
    %v1595 = vunpack.c.l.b16 %v1556
    %v1596 = vunpack.c.h.b16 %v1556
    %v1597 = vunpack.c.l.b16 %v1557
    %v1598 = vunpack.c.h.b16 %v1557
    %v1599 = vunpack.c.l.b16 %v1558
    %v1600 = vunpack.c.h.b16 %v1558
    %v1601 = vunpack.c.l.b16 %v1559
    %v1602 = vunpack.c.h.b16 %v1559
    %v1603 = vunpack.c.l.b16 %v1560
    %v1604 = vunpack.c.h.b16 %v1560
    %v1605 = vunpack.c.l.b16 %v1561
    %v1606 = vunpack.c.h.b16 %v1561
    %v1607 = vunpack.c.l.b16 %v1562
    %v1608 = vunpack.c.h.b16 %v1562
    %v1609 = vunpack.c.l.b16 %v1563
    %v1610 = vunpack.c.h.b16 %v1563
    %v1611 = vunpack.c.l.b16 %v1564
    %v1612 = vunpack.c.h.b16 %v1564
    %v1613 = vunpack.c.l.b16 %v1565
    %v1614 = vunpack.c.h.b16 %v1565
    %v1615 = vunpack.c.l.b16 %v1566
    %v1616 = vunpack.c.h.b16 %v1566
    %v1617 = vunpack.c.l.b16 %v1567
    %v1618 = vunpack.c.h.b16 %v1567
    %v1619 = vunpack.c.l.b16 %v1568
    %v1620 = vunpack.c.h.b16 %v1568
    %v1621 = vunpack.c.l.b16 %v1569
    %v1622 = vunpack.c.h.b16 %v1569
    %v1623 = vunpack.c.l.b16 %v1570
    %v1624 = vunpack.c.h.b16 %v1570
    %v1625 = vpack.c.b16 %v1595, %v1593
    %v1626 = vpack.c.b16 %v1596, %v1594
    %v1627 = vpack.c.b16 %v1599, %v1597
    %v1628 = vpack.c.b16 %v1600, %v1598
    %v1629 = vpack.c.b16 %v1603, %v1601
    %v1630 = vpack.c.b16 %v1604, %v1602
    %v1631 = vpack.c.b16 %v1607, %v1605
    %v1632 = vpack.c.b16 %v1608, %v1606
    %v1633 = vpack.c.b16 %v1611, %v1609
    %v1634 = vpack.c.b16 %v1612, %v1610
    %v1635 = vpack.c.b16 %v1615, %v1613
    %v1636 = vpack.c.b16 %v1616, %v1614
    %v1637 = vpack.c.b16 %v1619, %v1617
    %v1638 = vpack.c.b16 %v1620, %v1618
    %v1639 = vpack.c.b16 %v1623, %v1621
    %v1640 = vpack.c.b16 %v1624, %v1622
    %1657 = vmatpush.bf16.msra.mxu0 %v1639
    %1658 = vmatpush.bf16.msra.mxu0 %v1637
    %1659 = vmatpush.bf16.msra.mxu0 %v1635
    %1660 = vmatpush.bf16.msra.mxu0 %v1633
    %1661 = vmatpush.bf16.msra.mxu0 %v1631
    %1662 = vmatpush.bf16.msra.mxu0 %v1629
    %1663 = vmatpush.bf16.msra.mxu0 %v1627
    %1664 = vmatpush.bf16.msra.mxu0 %v1625
    %1665 = vmatmul.bf16.gmra.mxu0 %v1554
    %v1666 = vpop.f32.mrf.mxu0
    %v1667 = vadd.f32 %v1573, %v1666
    %v1668 = vpop.f32.mrf.mxu0
    %v1669 = vadd.f32 %v1573, %v1668
    %1670 = vdwg.mxu0
    %1671 = vmatpush.bf16.msra.mxu0 %v1640
    %1672 = vmatpush.bf16.msra.mxu0 %v1638
    %1673 = vmatpush.bf16.msra.mxu0 %v1636
    %1674 = vmatpush.bf16.msra.mxu0 %v1634
    %1675 = vmatpush.bf16.msra.mxu0 %v1632
    %1676 = vmatpush.bf16.msra.mxu0 %v1630
    %1677 = vmatpush.bf16.msra.mxu0 %v1628
    %1678 = vmatpush.bf16.msra.mxu0 %v1626
    %1679 = vmatmul.bf16.gmra.mxu0 %v1554
    %v1680 = vpop.f32.mrf.mxu0
    %v1681 = vadd.f32 %v1574, %v1680
    %v1682 = vpop.f32.mrf.mxu0
    %v1683 = vadd.f32 %v1574, %v1682
    %1684 = vdwg.mxu0
    %1685 = vst [vmem:[#allocation20] sm:$0xff] %v1667
    %1686 = vst [vmem:[#allocation20 + $0x8] sm:$0xff] %v1681
    %1687 = vst [vmem:[#allocation20 + $0x10] sm:$0xff] %v1669
    %1688 = vst [vmem:[#allocation20 + $0x18] sm:$0xff] %v1683
    %1689 = vst [vmem:[#allocation21] sm:$0xff] %v984
    %1690 = vst [vmem:[#allocation21 + $0x8] sm:$0xff] %v985
    %s1691 = scalar_lea.vmem [#allocation21], 16
    %1692 = vst [vmem:[%s1691] sm:$0xff] %v1552
    %1693 = vst [vmem:[%s1691 + $0x8] sm:$0xff] %v1553
    %1694 = vst [vmem:[#allocation23] sm:$0xff] %v980
    %1695 = vst [vmem:[#allocation23 + $0x8] sm:$0xff] %v981
    %s1696 = scalar_lea.vmem [#allocation23], 16
    %1697 = vst [vmem:[%s1696] sm:$0xff] %v1548
    %1698 = vst [vmem:[%s1696 + $0x8] sm:$0xff] %v1549
    // Predicated region
    $region78: #{tpu_custom_call.1} parent=1 // pred_check
      _
    $region79: #{tpu_custom_call.1} parent=1 // pred_check_branch
      %1700 = sbr.rel (0) target = $region81
    $region80: #{tpu_custom_call.1} parent=1 // pred_region
      %1702 = vsyncadd [#allocation6], 0
      %s1703 = sshll.u32 [#allocation20], 4
      %s1704 = int_to_ptr.vmem [resolvable:$true] %s1703
      %s1705 = sshll.u32 %s10, 4
      %s1706 = int_to_ptr.hbm [resolvable:$true] %s1705
      %1711 = dma.vmem_to_hbm [thread:$0]  %s1704, 512, %s1706, [#allocation6], 256, 256, 16
    $region81: #{tpu_custom_call.1} parent=1 // pred_fallthru
      _
    // Predicated region
    $region82: #{tpu_custom_call.1} parent=1 // pred_check
      _
    $region83: #{tpu_custom_call.1} parent=1 // pred_check_branch
      %1713 = sbr.rel (0) target = $region85
    $region84: #{tpu_custom_call.1} parent=1 // pred_region
      %1715 = vsyncadd [#allocation22], 0
      %s1716 = sshll.u32 [#allocation21], 4
      %s1717 = int_to_ptr.vmem [resolvable:$true] %s1716
      %s1718 = sshll.u32 %s11, 4
      %s1719 = int_to_ptr.hbm [resolvable:$true] %s1718
      %1724 = dma.vmem_to_hbm [thread:$0]  %s1717, 512, %s1719, [#allocation22], 128, 128, 8
    $region85: #{tpu_custom_call.1} parent=1 // pred_fallthru
      _
    // Predicated region
    $region86: #{tpu_custom_call.1} parent=1 // pred_check
      _
    $region87: #{tpu_custom_call.1} parent=1 // pred_check_branch
      %1726 = sbr.rel (0) target = $region89
    $region88: #{tpu_custom_call.1} parent=1 // pred_region
      %1728 = vsyncadd [#allocation22], 0
      %s1729 = sshll.u32 [#allocation23], 4
      %s1730 = int_to_ptr.vmem [resolvable:$true] %s1729
      %s1731 = sshll.u32 %s12, 4
      %s1732 = int_to_ptr.hbm [resolvable:$true] %s1731
      %1737 = dma.vmem_to_hbm [thread:$0]  %s1730, 512, %s1732, [#allocation22], 128, 128, 8
    $region89: #{tpu_custom_call.1} parent=1 // pred_fallthru
      _
    // Predicated region
    $region90: #{tpu_custom_call.1} parent=1 // pred_check
      _
    $region91: #{tpu_custom_call.1} parent=1 // pred_check_branch
      %1739 = sbr.rel (0) target = $region93
    $region92: #{tpu_custom_call.1} parent=1 // pred_region
      %1741 = dma.done [#allocation6], 512
    $region93: #{tpu_custom_call.1} parent=1 // pred_fallthru
      _
    // Predicated region
    $region94: #{tpu_custom_call.1} parent=1 // pred_check
      _
    $region95: #{tpu_custom_call.1} parent=1 // pred_check_branch
      %1743 = sbr.rel (0) target = $region97
    $region96: #{tpu_custom_call.1} parent=1 // pred_region
      %1745 = dma.done [#allocation22], 512
    $region97: #{tpu_custom_call.1} parent=1 // pred_fallthru
      _
    // Predicated region
    $region98: #{tpu_custom_call.1} parent=1 // pred_check
      _
    $region99: #{tpu_custom_call.1} parent=1 // pred_check_branch
      %1747 = sbr.rel (0) target = $region101
    $region100: #{tpu_custom_call.1} parent=1 // pred_region
      %1749 = dma.done [#allocation22], 512
    $region101: #{tpu_custom_call.1} parent=1 // pred_fallthru
      _
    %1750 = vsyncpa [#allocation5], 1
    %1751 = vsyncpa [#allocation10], 1
    %1752 = vsyncpa [#allocation13], 1
    %1753 = vsyncpa [#allocation16], 1
    %1754 = vsyncpa [#allocation19], 1
    %1755 = vsyncpa [#allocation6], 1
    %1756 = vsyncpa [#allocation22], 1
    %1757 = vsyncpa [#allocation7], 1

</llo_original>
